<compile_context>
chip_gen: v6e
topology: v6e:2x2x1
jax: 0.10.0
libtpu: 0.0.40
codegen_flags: <defaults>
</compile_context>

<pallas_src>
import functools
import math

import jax
import jax.numpy as jnp
from jax.experimental import pallas as pl
from jax.experimental.pallas import tpu as pltpu

LN_EPS = 1e-5     # nn.Transformer layer_norm_eps default
ROW_TILE = 256    # max rows per block; small enough for every TPU generation's scoped VMEM


def _round_up(x, m):
    return (x + m - 1) // m * m


def _row_block(m, max_tile=ROW_TILE):
    t = min(max_tile, _round_up(max(m, 8), 8))
    mp = _round_up(m, t)
    return t, mp


def _pad_rows(x, mp):
    m = x.shape[0]
    if mp == m:
        return x
    return jnp.pad(x, ((0, mp - m), (0, 0)))


# ----------------------------------------------------------------------------- kernels ----

def _linear_kernel(x_ref, w_ref, b_ref, o_ref, *, relu):
    y = jnp.dot(x_ref[...], w_ref[...], preferred_element_type=jnp.float32) + b_ref[...]
    if relu:
        y = jnp.maximum(y, 0.0)
    o_ref[...] = y.astype(o_ref.dtype)


def _linear_res_ln_kernel(x_ref, w_ref, b_ref, res_ref, g_ref, be_ref, o_ref):
    # y = LayerNorm(res + x @ W + b)   (fused: matmul + residual + LN, one HBM round trip)
    y = jnp.dot(x_ref[...], w_ref[...], preferred_element_type=jnp.float32)
    y = y + b_ref[...] + res_ref[...]
    mean = jnp.mean(y, axis=-1, keepdims=True)
    c = y - mean
    var = jnp.mean(c * c, axis=-1, keepdims=True)
    y = c * jax.lax.rsqrt(var + LN_EPS)
    o_ref[...] = (y * g_ref[...] + be_ref[...]).astype(o_ref.dtype)


def _ffn_res_ln_kernel(x_ref, w1_ref, b1_ref, w2_ref, b2_ref, g_ref, be_ref, o_ref):
    # y = LayerNorm(x + relu(x @ W1 + b1) @ W2 + b2)
    x = x_ref[...]
    h = jnp.dot(x, w1_ref[...], preferred_element_type=jnp.float32) + b1_ref[...]
    h = jnp.maximum(h, 0.0)
    y = jnp.dot(h, w2_ref[...], preferred_element_type=jnp.float32) + b2_ref[...]
    y = y + x
    mean = jnp.mean(y, axis=-1, keepdims=True)
    c = y - mean
    var = jnp.mean(c * c, axis=-1, keepdims=True)
    y = c * jax.lax.rsqrt(var + LN_EPS)
    o_ref[...] = (y * g_ref[...] + be_ref[...]).astype(o_ref.dtype)


def _ln_kernel(x_ref, g_ref, be_ref, o_ref):
    y = x_ref[...]
    mean = jnp.mean(y, axis=-1, keepdims=True)
    c = y - mean
    var = jnp.mean(c * c, axis=-1, keepdims=True)
    o_ref[...] = (c * jax.lax.rsqrt(var + LN_EPS) * g_ref[...] + be_ref[...]).astype(o_ref.dtype)


def _attn_kernel(q_ref, k_ref, v_ref, o_ref, *, scale):
    # one (batch, head) slice per grid step: softmax(q k^T * scale) v
    q = q_ref[0]                      # (S, dh)
    k = k_ref[0]
    v = v_ref[0]
    s = jax.lax.dot_general(q, k, (((1,), (1,)), ((), ())),
                            preferred_element_type=jnp.float32) * scale
    s = s - jnp.max(s, axis=-1, keepdims=True)
    p = jnp.exp(s)
    p = p / jnp.sum(p, axis=-1, keepdims=True)
    o_ref[0] = jnp.dot(p, v, preferred_element_type=jnp.float32).astype(o_ref.dtype)


def _embed_kernel(src_ref, w_ref, add_ref, o_ref):
    # out[b, s, :] = src[b, s] * (w_in * sqrt(D)) + (b_in * sqrt(D) + pe[b])
    o_ref[0] = src_ref[0] * w_ref[...] + add_ref[0]


# ---------------------------------------------------------------------------- wrappers ----

_PARALLEL = pltpu.CompilerParams(dimension_semantics=("parallel",))


def pallas_linear(x, w, b, *, relu=False):
    m, k = x.shape
    n = w.shape[1]
    t, mp = _row_block(m)
    out = pl.pallas_call(
        functools.partial(_linear_kernel, relu=relu),
        out_shape=jax.ShapeDtypeStruct((mp, n), jnp.float32),
        grid=(mp // t,),
        in_specs=[
            pl.BlockSpec((t, k), lambda i: (i, 0)),
            pl.BlockSpec((k, n), lambda i: (0, 0)),
            pl.BlockSpec((1, n), lambda i: (0, 0)),
        ],
        out_specs=pl.BlockSpec((t, n), lambda i: (i, 0)),
        compiler_params=_PARALLEL,
    )(_pad_rows(x, mp), w, b.reshape(1, n))
    return out[:m]


def pallas_linear_res_ln(x, w, b, res, g, be):
    m, k = x.shape
    n = w.shape[1]
    t, mp = _row_block(m)
    out = pl.pallas_call(
        _linear_res_ln_kernel,
        out_shape=jax.ShapeDtypeStruct((mp, n), jnp.float32),
        grid=(mp // t,),
        in_specs=[
            pl.BlockSpec((t, k), lambda i: (i, 0)),
            pl.BlockSpec((k, n), lambda i: (0, 0)),
            pl.BlockSpec((1, n), lambda i: (0, 0)),
            pl.BlockSpec((t, n), lambda i: (i, 0)),
            pl.BlockSpec((1, n), lambda i: (0, 0)),
            pl.BlockSpec((1, n), lambda i: (0, 0)),
        ],
        out_specs=pl.BlockSpec((t, n), lambda i: (i, 0)),
        compiler_params=_PARALLEL,
    )(_pad_rows(x, mp), w, b.reshape(1, n), _pad_rows(res, mp),
      g.reshape(1, n), be.reshape(1, n))
    return out[:m]


def pallas_ffn_res_ln(x, w1, b1, w2, b2, g, be):
    m, d = x.shape
    f = w1.shape[1]
    t, mp = _row_block(m)
    out = pl.pallas_call(
        _ffn_res_ln_kernel,
        out_shape=jax.ShapeDtypeStruct((mp, d), jnp.float32),
        grid=(mp // t,),
        in_specs=[
            pl.BlockSpec((t, d), lambda i: (i, 0)),
            pl.BlockSpec((d, f), lambda i: (0, 0)),
            pl.BlockSpec((1, f), lambda i: (0, 0)),
            pl.BlockSpec((f, d), lambda i: (0, 0)),
            pl.BlockSpec((1, d), lambda i: (0, 0)),
            pl.BlockSpec((1, d), lambda i: (0, 0)),
            pl.BlockSpec((1, d), lambda i: (0, 0)),
        ],
        out_specs=pl.BlockSpec((t, d), lambda i: (i, 0)),
        compiler_params=_PARALLEL,
    )(_pad_rows(x, mp), w1, b1.reshape(1, f), w2, b2.reshape(1, d),
      g.reshape(1, d), be.reshape(1, d))
    return out[:m]


def pallas_ln(x, g, be):
    m, d = x.shape
    t, mp = _row_block(m)
    out = pl.pallas_call(
        _ln_kernel,
        out_shape=jax.ShapeDtypeStruct((mp, d), jnp.float32),
        grid=(mp // t,),
        in_specs=[
            pl.BlockSpec((t, d), lambda i: (i, 0)),
            pl.BlockSpec((1, d), lambda i: (0, 0)),
            pl.BlockSpec((1, d), lambda i: (0, 0)),
        ],
        out_specs=pl.BlockSpec((t, d), lambda i: (i, 0)),
        compiler_params=_PARALLEL,
    )(_pad_rows(x, mp), g.reshape(1, d), be.reshape(1, d))
    return out[:m]


def pallas_attention(q, k, v):
    bh, s, dh = q.shape
    scale = 1.0 / math.sqrt(dh)
    return pl.pallas_call(
        functools.partial(_attn_kernel, scale=scale),
        out_shape=jax.ShapeDtypeStruct((bh, s, dh), jnp.float32),
        grid=(bh,),
        in_specs=[pl.BlockSpec((1, s, dh), lambda i: (i, 0, 0))] * 3,
        out_specs=pl.BlockSpec((1, s, dh), lambda i: (i, 0, 0)),
        compiler_params=_PARALLEL,
    )(q, k, v)


def pallas_embed(src, w_scaled, add_b):
    # src: (B, S), w_scaled: (1, D), add_b: (B, 1, D)  ->  (B, S, D)
    b, s = src.shape
    d = w_scaled.shape[1]
    return pl.pallas_call(
        _embed_kernel,
        out_shape=jax.ShapeDtypeStruct((b, s, d), jnp.float32),
        grid=(b,),
        in_specs=[
            pl.BlockSpec((1, s, 1), lambda i: (i, 0, 0)),
            pl.BlockSpec((1, d), lambda i: (0, 0)),
            pl.BlockSpec((1, 1, d), lambda i: (i, 0, 0)),
        ],
        out_specs=pl.BlockSpec((1, s, d), lambda i: (i, 0, 0)),
        compiler_params=_PARALLEL,
    )(src.reshape(b, s, 1), w_scaled, add_b)


# ------------------------------------------------------------------------ model (glue) ----

def _split_heads(t, b, s, h):
    d = t.shape[-1]
    dh = d // h
    return t.reshape(b, s, h, dh).transpose(0, 2, 1, 3).reshape(b * h, s, dh)


def _merge_heads(t, b, s, h):
    dh = t.shape[-1]
    return t.reshape(b, h, s, dh).transpose(0, 2, 1, 3).reshape(b * s, h * dh)


def mha_self(x_flat, in_w, in_b, b, s, h):
    d = x_flat.shape[-1]
    qkv = pallas_linear(x_flat, in_w.T, in_b)                 # one wide (M, 3D) projection
    q, k, v = qkv[:, :d], qkv[:, d:2 * d], qkv[:, 2 * d:]
    oh = pallas_attention(_split_heads(q, b, s, h),
                          _split_heads(k, b, s, h),
                          _split_heads(v, b, s, h))
    return _merge_heads(oh, b, s, h)


def mha_cross(x_flat, mem_flat, in_w, in_b, b, s, h):
    d = x_flat.shape[-1]
    q = pallas_linear(x_flat, in_w[:d].T, in_b[:d])
    kv = pallas_linear(mem_flat, in_w[d:].T, in_b[d:])        # (M, 2D) fused K/V projection
    k, v = kv[:, :d], kv[:, d:]
    oh = pallas_attention(_split_heads(q, b, s, h),
                          _split_heads(k, b, s, h),
                          _split_heads(v, b, s, h))
    return _merge_heads(oh, b, s, h)


def encoder_layer(x, p, b, s, h):
    a = mha_self(x, p["sa_in_w"], p["sa_in_b"], b, s, h)
    x = pallas_linear_res_ln(a, p["sa_out_w"].T, p["sa_out_b"], x, p["ln1_g"], p["ln1_b"])
    x = pallas_ffn_res_ln(x, p["ff_w1"].T, p["ff_b1"], p["ff_w2"].T, p["ff_b2"],
                          p["ln2_g"], p["ln2_b"])
    return x


def decoder_layer(x, mem, p, b, s, h):
    a = mha_self(x, p["sa_in_w"], p["sa_in_b"], b, s, h)
    x = pallas_linear_res_ln(a, p["sa_out_w"].T, p["sa_out_b"], x, p["ln1_g"], p["ln1_b"])
    a = mha_cross(x, mem, p["ca_in_w"], p["ca_in_b"], b, s, h)
    x = pallas_linear_res_ln(a, p["ca_out_w"].T, p["ca_out_b"], x, p["ln2_g"], p["ln2_b"])
    x = pallas_ffn_res_ln(x, p["ff_w1"].T, p["ff_b1"], p["ff_w2"].T, p["ff_b2"],
                          p["ln3_g"], p["ln3_b"])
    return x


def transformer_autoencoder_forward(src, params, *, nhead):
    b, s = src.shape
    d = params["enc_in_w"].shape[0]
    scale = math.sqrt(d)

    # PulseEncoder: Linear(1, D) * sqrt(D) + positional encoding.
    # NOTE: the PyTorch module adds pe[:batch] *before* the permute (quirk kept faithfully):
    # each batch element b gets pe[b] added to every sequence position.
    w_scaled = params["enc_in_w"][:, 0][None, :] * scale                     # (1, D)
    add_b = (params["enc_in_b"] * scale)[None, :] + params["pe"][:b]         # (B, D)
    x = pallas_embed(src, w_scaled, add_b.reshape(b, 1, d))                  # (B, S, D)
    x = x.reshape(b * s, d)

    for p in params["enc_layers"]:
        x = encoder_layer(x, p, b, s, nhead)
    mem = pallas_ln(x, params["enc_norm_g"], params["enc_norm_b"])

    # PulseDecoder: transformer.decoder(memory, memory) -> Linear(D, 1)
    y = mem
    for p in params["dec_layers"]:
        y = decoder_layer(y, mem, p, b, s, nhead)
    y = pallas_ln(y, params["dec_norm_g"], params["dec_norm_b"])

    out = pallas_linear(y, params["head_w"].T, params["head_b"])             # (B*S, 1)
    return out.reshape(b, s)


# ----------------------------------------------------------------------------- params ----

def _pe_table(max_len, d):
    pos = jnp.arange(max_len, dtype=jnp.float32)[:, None]
    div = jnp.exp(jnp.arange(0, d, 2, dtype=jnp.float32) * (-math.log(10000.0) / d))
    ang = pos * div
    return jnp.stack([jnp.sin(ang), jnp.cos(ang)], axis=-1).reshape(max_len, d)


def init_params(key, d, n_enc, n_dec, dff, max_len=64):
    keys = iter(jax.random.split(key, 512))

    def nrm(shape, scl=0.1):
        return (scl * jax.random.normal(next(keys), shape)).astype(jnp.float32)

    def ln_pair():
        return jnp.ones((d,), jnp.float32) + nrm((d,), 0.05), nrm((d,), 0.05)

    def enc_layer():
        g1, b1 = ln_pair(); g2, b2 = ln_pair()
        return dict(sa_in_w=nrm((3 * d, d)), sa_in_b=nrm((3 * d,)),
                    sa_out_w=nrm((d, d)), sa_out_b=nrm((d,)),
                    ff_w1=nrm((dff, d)), ff_b1=nrm((dff,)),
                    ff_w2=nrm((d, dff)), ff_b2=nrm((d,)),
                    ln1_g=g1, ln1_b=b1, ln2_g=g2, ln2_b=b2)

    def dec_layer():
        g1, b1 = ln_pair(); g2, b2 = ln_pair(); g3, b3 = ln_pair()
        return dict(sa_in_w=nrm((3 * d, d)), sa_in_b=nrm((3 * d,)),
                    sa_out_w=nrm((d, d)), sa_out_b=nrm((d,)),
                    ca_in_w=nrm((3 * d, d)), ca_in_b=nrm((3 * d,)),
                    ca_out_w=nrm((d, d)), ca_out_b=nrm((d,)),
                    ff_w1=nrm((dff, d)), ff_b1=nrm((dff,)),
                    ff_w2=nrm((d, dff)), ff_b2=nrm((d,)),
                    ln1_g=g1, ln1_b=b1, ln2_g=g2, ln2_b=b2, ln3_g=g3, ln3_b=b3)

    eg, eb = ln_pair()
    dg, db = ln_pair()
    return dict(enc_in_w=nrm((d, 1), 0.5), enc_in_b=nrm((d,), 0.1),
                pe=_pe_table(max_len, d),
                enc_layers=[enc_layer() for _ in range(n_enc)],
                enc_norm_g=eg, enc_norm_b=eb,
                dec_layers=[dec_layer() for _ in range(n_dec)],
                dec_norm_g=dg, dec_norm_b=db,
                head_w=nrm((1, d)), head_b=nrm((1,)))


# -------------------------------------------------------------------------- reference ----

def _reference(src, params, *, nhead):
    b, s = src.shape
    d = params["enc_in_w"].shape[0]
    h = nhead
    dh = d // h
    scale = math.sqrt(d)

    def ln(x, g, be):
        m = jnp.mean(x, axis=-1, keepdims=True)
        v = jnp.mean((x - m) ** 2, axis=-1, keepdims=True)
        return (x - m) * jax.lax.rsqrt(v + LN_EPS) * g + be

    def mha(q_in, kv_in, in_w, in_b, out_w, out_b):
        q = q_in @ in_w[:d].T + in_b[:d]
        k = kv_in @ in_w[d:2 * d].T + in_b[d:2 * d]
        v = kv_in @ in_w[2 * d:].T + in_b[2 * d:]
        def heads(t): return t.reshape(b, s, h, dh).transpose(0, 2, 1, 3)
        sc = jnp.einsum("bhqd,bhkd->bhqk", heads(q), heads(k)) / math.sqrt(dh)
        p = jax.nn.softmax(sc, axis=-1)
        o = jnp.einsum("bhqk,bhkd->bhqd", p, heads(v))
        o = o.transpose(0, 2, 1, 3).reshape(b, s, d)
        return o @ out_w.T + out_b

    x = src[..., None] * (params["enc_in_w"][:, 0] * scale) + params["enc_in_b"] * scale
    x = x + params["pe"][:b][:, None, :]
    for p in params["enc_layers"]:
        a = mha(x, x, p["sa_in_w"], p["sa_in_b"], p["sa_out_w"], p["sa_out_b"])
        x = ln(x + a, p["ln1_g"], p["ln1_b"])
        f = jnp.maximum(x @ p["ff_w1"].T + p["ff_b1"], 0.0) @ p["ff_w2"].T + p["ff_b2"]
        x = ln(x + f, p["ln2_g"], p["ln2_b"])
    mem = ln(x, params["enc_norm_g"], params["enc_norm_b"])

    y = mem
    for p in params["dec_layers"]:
        a = mha(y, y, p["sa_in_w"], p["sa_in_b"], p["sa_out_w"], p["sa_out_b"])
        y = ln(y + a, p["ln1_g"], p["ln1_b"])
        a = mha(y, mem, p["ca_in_w"], p["ca_in_b"], p["ca_out_w"], p["ca_out_b"])
        y = ln(y + a, p["ln2_g"], p["ln2_b"])
        f = jnp.maximum(y @ p["ff_w1"].T + p["ff_b1"], 0.0) @ p["ff_w2"].T + p["ff_b2"]
        y = ln(y + f, p["ln3_g"], p["ln3_b"])
    y = ln(y, params["dec_norm_g"], params["dec_norm_b"])
    return (y @ params["head_w"].T + params["head_b"])[..., 0]


# --------------------------------------------------------------------------------- main ----

if __name__ == "__main__":
    key = jax.random.PRNGKey(0)
    k_src, k_par = jax.random.split(key)

    # Small shapes consistent with the module: (batch, seq) input pulse series.
    B, S = 2, 8
    D_MODEL, NHEAD = 32, 4
    N_ENC, N_DEC, DFF = 2, 2, 64

    src = jax.random.normal(k_src, (B, S), dtype=jnp.float32)
    params = init_params(k_par, D_MODEL, N_ENC, N_DEC, DFF)

    fwd = jax.jit(functools.partial(transformer_autoencoder_forward, nhead=NHEAD))
    out = jax.block_until_ready(fwd(src, params))

    with jax.default_matmul_precision("highest"):
        ref = jax.block_until_ready(_reference(src, params, nhead=NHEAD))

    assert out.shape == (B, S)
    assert bool(jnp.allclose(out, ref, atol=2e-2, rtol=2e-2)), "mismatch vs reference"

    print("KERNEL_OK")
</pallas_src>

<mosaic_0001>
module attributes {stable_mosaic.version = 11 : i64} {
  func.func @_linear_kernel(%arg0: i32, %arg1: memref<16x32xf32, #tpu.memory_space<vmem>>, %arg2: memref<32x96xf32, #tpu.memory_space<vmem>>, %arg3: memref<1x96xf32, #tpu.memory_space<vmem>>, %arg4: memref<16x96xf32, #tpu.memory_space<vmem>>) attributes {dimension_semantics = [#tpu.dimension_semantics<parallel>], iteration_bounds = array<i64: 1>, scalar_prefetch = 0 : i64, scratch_operands = 0 : i64, tpu.core_type = #tpu.core_type<tc>, window_params = [{transform_indices = @transform_0, window_bounds = array<i64: 16, 32>}, {pipeline_mode = #tpu.pipeline_mode<synchronous>, transform_indices = @transform_1, window_bounds = array<i64: 32, 96>}, {pipeline_mode = #tpu.pipeline_mode<synchronous>, transform_indices = @transform_2, window_bounds = array<i64: 1, 96>}, {transform_indices = @transform_3, window_bounds = array<i64: 16, 96>}]} {
    %c0 = arith.constant 0 : index
    %c0_0 = arith.constant 0 : index
    %0 = vector.load %arg1[%c0, %c0_0] : memref<16x32xf32, #tpu.memory_space<vmem>>, vector<16x32xf32>
    %c0_1 = arith.constant 0 : index
    %c0_2 = arith.constant 0 : index
    %1 = vector.load %arg2[%c0_1, %c0_2] : memref<32x96xf32, #tpu.memory_space<vmem>>, vector<32x96xf32>
    %cst = arith.constant dense<0.000000e+00> : vector<16x96xf32>
    %2 = tpu.matmul %0, %1, %cst {dimension_numbers = #tpu.dot_dimension_numbers<[1], [0], [0], [1], [0, 0, 1, 1], [], []>} : vector<16x32xf32>, vector<32x96xf32>, vector<16x96xf32> -> vector<16x96xf32>
    %c0_3 = arith.constant 0 : index
    %c0_4 = arith.constant 0 : index
    %3 = vector.load %arg3[%c0_3, %c0_4] : memref<1x96xf32, #tpu.memory_space<vmem>>, vector<1x96xf32>
    %4 = vector.broadcast %3 : vector<1x96xf32> to vector<16x96xf32>
    %5 = arith.addf %2, %4 : vector<16x96xf32>
    %c0_5 = arith.constant 0 : index
    %c0_6 = arith.constant 0 : index
    %6 = vector.load %arg4[%c0_5, %c0_6] : memref<16x96xf32, #tpu.memory_space<vmem>>, vector<16x96xf32>
    tpu.vector_store %arg4[%c0_5, %c0_6], %5 {strides = array<i32>} : memref<16x96xf32, #tpu.memory_space<vmem>>, vector<16x96xf32>,
    return
  }
  func.func @transform_0(%arg0: i32) -> (i32, i32) {
    %c0_i32 = arith.constant 0 : i32
    %c0_i32_0 = arith.constant 0 : i32
    return %arg0, %c0_i32 : i32, i32
  }
  func.func @transform_1(%arg0: i32) -> (i32, i32) {
    %c0_i32 = arith.constant 0 : i32
    %c0_i32_0 = arith.constant 0 : i32
    %c0_i32_1 = arith.constant 0 : i32
    return %c0_i32, %c0_i32_0 : i32, i32
  }
  func.func @transform_2(%arg0: i32) -> (i32, i32) {
    %c0_i32 = arith.constant 0 : i32
    %c0_i32_0 = arith.constant 0 : i32
    %c0_i32_1 = arith.constant 0 : i32
    return %c0_i32, %c0_i32_0 : i32, i32
  }
  func.func @transform_3(%arg0: i32) -> (i32, i32) {
    %c0_i32 = arith.constant 0 : i32
    %c0_i32_0 = arith.constant 0 : i32
    return %arg0, %c0_i32 : i32, i32
  }
}

module attributes {stable_mosaic.version = 11 : i64} {
  func.func @_embed_kernel(%arg0: i32, %arg1: memref<1x8x1xf32, #tpu.memory_space<vmem>>, %arg2: memref<1x32xf32, #tpu.memory_space<vmem>>, %arg3: memref<1x1x32xf32, #tpu.memory_space<vmem>>, %arg4: memref<1x8x32xf32, #tpu.memory_space<vmem>>) attributes {dimension_semantics = [#tpu.dimension_semantics<parallel>], iteration_bounds = array<i64: 2>, scalar_prefetch = 0 : i64, scratch_operands = 0 : i64, tpu.core_type = #tpu.core_type<tc>, window_params = [{transform_indices = @transform_0, window_bounds = array<i64: 1, 8, 1>}, {pipeline_mode = #tpu.pipeline_mode<synchronous>, transform_indices = @transform_1, window_bounds = array<i64: 1, 32>}, {transform_indices = @transform_2, window_bounds = array<i64: 1, 1, 32>}, {transform_indices = @transform_3, window_bounds = array<i64: 1, 8, 32>}]} {
    %c0 = arith.constant 0 : index
    %c0_0 = arith.constant 0 : index
    %c0_1 = arith.constant 0 : index
    %0 = vector.load %arg1[%c0, %c0_0, %c0_1] : memref<1x8x1xf32, #tpu.memory_space<vmem>>, vector<1x8x1xf32>
    %1 = vector.shape_cast %0 : vector<1x8x1xf32> to vector<8x1xf32>
    %c0_2 = arith.constant 0 : index
    %c0_3 = arith.constant 0 : index
    %2 = vector.load %arg2[%c0_2, %c0_3] : memref<1x32xf32, #tpu.memory_space<vmem>>, vector<1x32xf32>
    %3 = vector.broadcast %1 : vector<8x1xf32> to vector<8x32xf32>
    %4 = vector.broadcast %2 : vector<1x32xf32> to vector<8x32xf32>
    %5 = arith.mulf %3, %4 : vector<8x32xf32>
    %c0_4 = arith.constant 0 : index
    %c0_5 = arith.constant 0 : index
    %c0_6 = arith.constant 0 : index
    %6 = vector.load %arg3[%c0_4, %c0_5, %c0_6] : memref<1x1x32xf32, #tpu.memory_space<vmem>>, vector<1x1x32xf32>
    %7 = vector.shape_cast %6 : vector<1x1x32xf32> to vector<1x32xf32>
    %8 = vector.broadcast %7 : vector<1x32xf32> to vector<8x32xf32>
    %9 = arith.addf %5, %8 : vector<8x32xf32>
    %c0_7 = arith.constant 0 : index
    %c0_8 = arith.constant 0 : index
    %c0_9 = arith.constant 0 : index
    %10 = vector.load %arg4[%c0_7, %c0_8, %c0_9] : memref<1x8x32xf32, #tpu.memory_space<vmem>>, vector<1x8x32xf32>
    %11 = vector.shape_cast %10 : vector<1x8x32xf32> to vector<8x32xf32>
    %12 = vector.shape_cast %9 : vector<8x32xf32> to vector<1x8x32xf32>
    tpu.vector_store %arg4[%c0_7, %c0_8, %c0_9], %12 {strides = array<i32>} : memref<1x8x32xf32, #tpu.memory_space<vmem>>, vector<1x8x32xf32>,
    return
  }
  func.func @transform_0(%arg0: i32) -> (i32, i32, i32) {
    %c0_i32 = arith.constant 0 : i32
    %c0_i32_0 = arith.constant 0 : i32
    %c0_i32_1 = arith.constant 0 : i32
    return %arg0, %c0_i32, %c0_i32_0 : i32, i32, i32
  }
  func.func @transform_1(%arg0: i32) -> (i32, i32) {
    %c0_i32 = arith.constant 0 : i32
    %c0_i32_0 = arith.constant 0 : i32
    %c0_i32_1 = arith.constant 0 : i32
    return %c0_i32, %c0_i32_0 : i32, i32
  }
  func.func @transform_2(%arg0: i32) -> (i32, i32, i32) {
    %c0_i32 = arith.constant 0 : i32
    %c0_i32_0 = arith.constant 0 : i32
    %c0_i32_1 = arith.constant 0 : i32
    return %arg0, %c0_i32, %c0_i32_0 : i32, i32, i32
  }
  func.func @transform_3(%arg0: i32) -> (i32, i32, i32) {
    %c0_i32 = arith.constant 0 : i32
    %c0_i32_0 = arith.constant 0 : i32
    %c0_i32_1 = arith.constant 0 : i32
    return %arg0, %c0_i32, %c0_i32_0 : i32, i32, i32
  }
}

module attributes {stable_mosaic.version = 11 : i64} {
  func.func @_attn_kernel(%arg0: i32, %arg1: memref<1x8x8xf32, #tpu.memory_space<vmem>>, %arg2: memref<1x8x8xf32, #tpu.memory_space<vmem>>, %arg3: memref<1x8x8xf32, #tpu.memory_space<vmem>>, %arg4: memref<1x8x8xf32, #tpu.memory_space<vmem>>) attributes {dimension_semantics = [#tpu.dimension_semantics<parallel>], iteration_bounds = array<i64: 8>, scalar_prefetch = 0 : i64, scratch_operands = 0 : i64, tpu.core_type = #tpu.core_type<tc>, window_params = [{transform_indices = @transform_0, window_bounds = array<i64: 1, 8, 8>}, {transform_indices = @transform_1, window_bounds = array<i64: 1, 8, 8>}, {transform_indices = @transform_2, window_bounds = array<i64: 1, 8, 8>}, {transform_indices = @transform_3, window_bounds = array<i64: 1, 8, 8>}]} {
    %c0 = arith.constant 0 : index
    %c0_0 = arith.constant 0 : index
    %c0_1 = arith.constant 0 : index
    %0 = vector.load %arg1[%c0, %c0_0, %c0_1] : memref<1x8x8xf32, #tpu.memory_space<vmem>>, vector<1x8x8xf32>
    %1 = vector.shape_cast %0 : vector<1x8x8xf32> to vector<8x8xf32>
    %c0_2 = arith.constant 0 : index
    %c0_3 = arith.constant 0 : index
    %c0_4 = arith.constant 0 : index
    %2 = vector.load %arg2[%c0_2, %c0_3, %c0_4] : memref<1x8x8xf32, #tpu.memory_space<vmem>>, vector<1x8x8xf32>
    %3 = vector.shape_cast %2 : vector<1x8x8xf32> to vector<8x8xf32>
    %c0_5 = arith.constant 0 : index
    %c0_6 = arith.constant 0 : index
    %c0_7 = arith.constant 0 : index
    %4 = vector.load %arg3[%c0_5, %c0_6, %c0_7] : memref<1x8x8xf32, #tpu.memory_space<vmem>>, vector<1x8x8xf32>
    %5 = vector.shape_cast %4 : vector<1x8x8xf32> to vector<8x8xf32>
    %cst = arith.constant dense<0.000000e+00> : vector<8x8xf32>
    %6 = tpu.matmul %1, %3, %cst {dimension_numbers = #tpu.dot_dimension_numbers<[1], [1], [0], [0], [0, 0, 1, 0], [], []>} : vector<8x8xf32>, vector<8x8xf32>, vector<8x8xf32> -> vector<8x8xf32>
    %cst_8 = arith.constant 0.353553385 : f32
    %7 = vector.broadcast %cst_8 : f32 to vector<8x8xf32>
    %8 = arith.mulf %6, %7 : vector<8x8xf32>
    %cst_9 = arith.constant dense<0xFF800000> : vector<8xf32>
    %9 = vector.multi_reduction <maximumf>, %8, %cst_9 [1] : vector<8x8xf32> to vector<8xf32>
    %10 = vector.shape_cast %9 : vector<8xf32> to vector<8x1xf32>
    %11 = vector.broadcast %10 : vector<8x1xf32> to vector<8x8xf32>
    %12 = arith.subf %8, %11 : vector<8x8xf32>
    %13 = math.exp %12 : vector<8x8xf32>
    %cst_10 = arith.constant dense<0.000000e+00> : vector<8xf32>
    %14 = vector.multi_reduction <add>, %13, %cst_10 [1] : vector<8x8xf32> to vector<8xf32>
    %15 = vector.shape_cast %14 : vector<8xf32> to vector<8x1xf32>
    %16 = vector.broadcast %15 : vector<8x1xf32> to vector<8x8xf32>
    %17 = arith.divf %13, %16 : vector<8x8xf32>
    %cst_11 = arith.constant dense<0.000000e+00> : vector<8x8xf32>
    %18 = tpu.matmul %17, %5, %cst_11 {dimension_numbers = #tpu.dot_dimension_numbers<[1], [0], [0], [1], [0, 0, 1, 1], [], []>} : vector<8x8xf32>, vector<8x8xf32>, vector<8x8xf32> -> vector<8x8xf32>
    %c0_12 = arith.constant 0 : index
    %c0_13 = arith.constant 0 : index
    %c0_14 = arith.constant 0 : index
    %19 = vector.load %arg4[%c0_12, %c0_13, %c0_14] : memref<1x8x8xf32, #tpu.memory_space<vmem>>, vector<1x8x8xf32>
    %20 = vector.shape_cast %19 : vector<1x8x8xf32> to vector<8x8xf32>
    %21 = vector.shape_cast %18 : vector<8x8xf32> to vector<1x8x8xf32>
    tpu.vector_store %arg4[%c0_12, %c0_13, %c0_14], %21 {strides = array<i32>} : memref<1x8x8xf32, #tpu.memory_space<vmem>>, vector<1x8x8xf32>,
    return
  }
  func.func @transform_0(%arg0: i32) -> (i32, i32, i32) {
    %c0_i32 = arith.constant 0 : i32
    %c0_i32_0 = arith.constant 0 : i32
    %c0_i32_1 = arith.constant 0 : i32
    return %arg0, %c0_i32, %c0_i32_0 : i32, i32, i32
  }
  func.func @transform_1(%arg0: i32) -> (i32, i32, i32) {
    %c0_i32 = arith.constant 0 : i32
    %c0_i32_0 = arith.constant 0 : i32
    %c0_i32_1 = arith.constant 0 : i32
    return %arg0, %c0_i32, %c0_i32_0 : i32, i32, i32
  }
  func.func @transform_2(%arg0: i32) -> (i32, i32, i32) {
    %c0_i32 = arith.constant 0 : i32
    %c0_i32_0 = arith.constant 0 : i32
    %c0_i32_1 = arith.constant 0 : i32
    return %arg0, %c0_i32, %c0_i32_0 : i32, i32, i32
  }
  func.func @transform_3(%arg0: i32) -> (i32, i32, i32) {
    %c0_i32 = arith.constant 0 : i32
    %c0_i32_0 = arith.constant 0 : i32
    %c0_i32_1 = arith.constant 0 : i32
    return %arg0, %c0_i32, %c0_i32_0 : i32, i32, i32
  }
}

module attributes {stable_mosaic.version = 11 : i64} {
  func.func @_linear_res_ln_kernel(%arg0: i32, %arg1: memref<16x32xf32, #tpu.memory_space<vmem>>, %arg2: memref<32x32xf32, #tpu.memory_space<vmem>>, %arg3: memref<1x32xf32, #tpu.memory_space<vmem>>, %arg4: memref<16x32xf32, #tpu.memory_space<vmem>>, %arg5: memref<1x32xf32, #tpu.memory_space<vmem>>, %arg6: memref<1x32xf32, #tpu.memory_space<vmem>>, %arg7: memref<16x32xf32, #tpu.memory_space<vmem>>) attributes {dimension_semantics = [#tpu.dimension_semantics<parallel>], iteration_bounds = array<i64: 1>, scalar_prefetch = 0 : i64, scratch_operands = 0 : i64, tpu.core_type = #tpu.core_type<tc>, window_params = [{transform_indices = @transform_0, window_bounds = array<i64: 16, 32>}, {pipeline_mode = #tpu.pipeline_mode<synchronous>, transform_indices = @transform_1, window_bounds = array<i64: 32, 32>}, {pipeline_mode = #tpu.pipeline_mode<synchronous>, transform_indices = @transform_2, window_bounds = array<i64: 1, 32>}, {transform_indices = @transform_3, window_bounds = array<i64: 16, 32>}, {pipeline_mode = #tpu.pipeline_mode<synchronous>, transform_indices = @transform_4, window_bounds = array<i64: 1, 32>}, {pipeline_mode = #tpu.pipeline_mode<synchronous>, transform_indices = @transform_5, window_bounds = array<i64: 1, 32>}, {transform_indices = @transform_6, window_bounds = array<i64: 16, 32>}]} {
    %c0 = arith.constant 0 : index
    %c0_0 = arith.constant 0 : index
    %0 = vector.load %arg1[%c0, %c0_0] : memref<16x32xf32, #tpu.memory_space<vmem>>, vector<16x32xf32>
    %c0_1 = arith.constant 0 : index
    %c0_2 = arith.constant 0 : index
    %1 = vector.load %arg2[%c0_1, %c0_2] : memref<32x32xf32, #tpu.memory_space<vmem>>, vector<32x32xf32>
    %cst = arith.constant dense<0.000000e+00> : vector<16x32xf32>
    %2 = tpu.matmul %0, %1, %cst {dimension_numbers = #tpu.dot_dimension_numbers<[1], [0], [0], [1], [0, 0, 1, 1], [], []>} : vector<16x32xf32>, vector<32x32xf32>, vector<16x32xf32> -> vector<16x32xf32>
    %c0_3 = arith.constant 0 : index
    %c0_4 = arith.constant 0 : index
    %3 = vector.load %arg3[%c0_3, %c0_4] : memref<1x32xf32, #tpu.memory_space<vmem>>, vector<1x32xf32>
    %4 = vector.broadcast %3 : vector<1x32xf32> to vector<16x32xf32>
    %5 = arith.addf %2, %4 : vector<16x32xf32>
    %c0_5 = arith.constant 0 : index
    %c0_6 = arith.constant 0 : index
    %6 = vector.load %arg4[%c0_5, %c0_6] : memref<16x32xf32, #tpu.memory_space<vmem>>, vector<16x32xf32>
    %7 = arith.addf %5, %6 : vector<16x32xf32>
    %cst_7 = arith.constant dense<0.000000e+00> : vector<16xf32>
    %8 = vector.multi_reduction <add>, %7, %cst_7 [1] : vector<16x32xf32> to vector<16xf32>
    %9 = vector.shape_cast %8 : vector<16xf32> to vector<16x1xf32>
    %cst_8 = arith.constant 3.200000e+01 : f32
    %10 = vector.broadcast %cst_8 : f32 to vector<16x1xf32>
    %11 = arith.divf %9, %10 : vector<16x1xf32>
    %12 = vector.broadcast %11 : vector<16x1xf32> to vector<16x32xf32>
    %13 = arith.subf %7, %12 : vector<16x32xf32>
    %14 = arith.mulf %13, %13 : vector<16x32xf32>
    %cst_9 = arith.constant dense<0.000000e+00> : vector<16xf32>
    %15 = vector.multi_reduction <add>, %14, %cst_9 [1] : vector<16x32xf32> to vector<16xf32>
    %16 = vector.shape_cast %15 : vector<16xf32> to vector<16x1xf32>
    %cst_10 = arith.constant 3.200000e+01 : f32
    %17 = vector.broadcast %cst_10 : f32 to vector<16x1xf32>
    %18 = arith.divf %16, %17 : vector<16x1xf32>
    %cst_11 = arith.constant 9.99999974E-6 : f32
    %19 = vector.broadcast %cst_11 : f32 to vector<16x1xf32>
    %20 = arith.addf %18, %19 : vector<16x1xf32>
    %21 = math.rsqrt %20 : vector<16x1xf32>
    %22 = vector.broadcast %21 : vector<16x1xf32> to vector<16x32xf32>
    %23 = arith.mulf %13, %22 : vector<16x32xf32>
    %c0_12 = arith.constant 0 : index
    %c0_13 = arith.constant 0 : index
    %24 = vector.load %arg5[%c0_12, %c0_13] : memref<1x32xf32, #tpu.memory_space<vmem>>, vector<1x32xf32>
    %25 = vector.broadcast %24 : vector<1x32xf32> to vector<16x32xf32>
    %26 = arith.mulf %23, %25 : vector<16x32xf32>
    %c0_14 = arith.constant 0 : index
    %c0_15 = arith.constant 0 : index
    %27 = vector.load %arg6[%c0_14, %c0_15] : memref<1x32xf32, #tpu.memory_space<vmem>>, vector<1x32xf32>
    %28 = vector.broadcast %27 : vector<1x32xf32> to vector<16x32xf32>
    %29 = arith.addf %26, %28 : vector<16x32xf32>
    %c0_16 = arith.constant 0 : index
    %c0_17 = arith.constant 0 : index
    %30 = vector.load %arg7[%c0_16, %c0_17] : memref<16x32xf32, #tpu.memory_space<vmem>>, vector<16x32xf32>
    tpu.vector_store %arg7[%c0_16, %c0_17], %29 {strides = array<i32>} : memref<16x32xf32, #tpu.memory_space<vmem>>, vector<16x32xf32>,
    return
  }
  func.func @transform_0(%arg0: i32) -> (i32, i32) {
    %c0_i32 = arith.constant 0 : i32
    %c0_i32_0 = arith.constant 0 : i32
    return %arg0, %c0_i32 : i32, i32
  }
  func.func @transform_1(%arg0: i32) -> (i32, i32) {
    %c0_i32 = arith.constant 0 : i32
    %c0_i32_0 = arith.constant 0 : i32
    %c0_i32_1 = arith.constant 0 : i32
    return %c0_i32, %c0_i32_0 : i32, i32
  }
  func.func @transform_2(%arg0: i32) -> (i32, i32) {
    %c0_i32 = arith.constant 0 : i32
    %c0_i32_0 = arith.constant 0 : i32
    %c0_i32_1 = arith.constant 0 : i32
    return %c0_i32, %c0_i32_0 : i32, i32
  }
  func.func @transform_3(%arg0: i32) -> (i32, i32) {
    %c0_i32 = arith.constant 0 : i32
    %c0_i32_0 = arith.constant 0 : i32
    return %arg0, %c0_i32 : i32, i32
  }
  func.func @transform_4(%arg0: i32) -> (i32, i32) {
    %c0_i32 = arith.constant 0 : i32
    %c0_i32_0 = arith.constant 0 : i32
    %c0_i32_1 = arith.constant 0 : i32
    return %c0_i32, %c0_i32_0 : i32, i32
  }
  func.func @transform_5(%arg0: i32) -> (i32, i32) {
    %c0_i32 = arith.constant 0 : i32
    %c0_i32_0 = arith.constant 0 : i32
    %c0_i32_1 = arith.constant 0 : i32
    return %c0_i32, %c0_i32_0 : i32, i32
  }
  func.func @transform_6(%arg0: i32) -> (i32, i32) {
    %c0_i32 = arith.constant 0 : i32
    %c0_i32_0 = arith.constant 0 : i32
    return %arg0, %c0_i32 : i32, i32
  }
}

module attributes {stable_mosaic.version = 11 : i64} {
  func.func @_ffn_res_ln_kernel(%arg0: i32, %arg1: memref<16x32xf32, #tpu.memory_space<vmem>>, %arg2: memref<32x64xf32, #tpu.memory_space<vmem>>, %arg3: memref<1x64xf32, #tpu.memory_space<vmem>>, %arg4: memref<64x32xf32, #tpu.memory_space<vmem>>, %arg5: memref<1x32xf32, #tpu.memory_space<vmem>>, %arg6: memref<1x32xf32, #tpu.memory_space<vmem>>, %arg7: memref<1x32xf32, #tpu.memory_space<vmem>>, %arg8: memref<16x32xf32, #tpu.memory_space<vmem>>) attributes {dimension_semantics = [#tpu.dimension_semantics<parallel>], iteration_bounds = array<i64: 1>, scalar_prefetch = 0 : i64, scratch_operands = 0 : i64, tpu.core_type = #tpu.core_type<tc>, window_params = [{transform_indices = @transform_0, window_bounds = array<i64: 16, 32>}, {pipeline_mode = #tpu.pipeline_mode<synchronous>, transform_indices = @transform_1, window_bounds = array<i64: 32, 64>}, {pipeline_mode = #tpu.pipeline_mode<synchronous>, transform_indices = @transform_2, window_bounds = array<i64: 1, 64>}, {pipeline_mode = #tpu.pipeline_mode<synchronous>, transform_indices = @transform_3, window_bounds = array<i64: 64, 32>}, {pipeline_mode = #tpu.pipeline_mode<synchronous>, transform_indices = @transform_4, window_bounds = array<i64: 1, 32>}, {pipeline_mode = #tpu.pipeline_mode<synchronous>, transform_indices = @transform_5, window_bounds = array<i64: 1, 32>}, {pipeline_mode = #tpu.pipeline_mode<synchronous>, transform_indices = @transform_6, window_bounds = array<i64: 1, 32>}, {transform_indices = @transform_7, window_bounds = array<i64: 16, 32>}]} {
    %c0 = arith.constant 0 : index
    %c0_0 = arith.constant 0 : index
    %0 = vector.load %arg1[%c0, %c0_0] : memref<16x32xf32, #tpu.memory_space<vmem>>, vector<16x32xf32>
    %c0_1 = arith.constant 0 : index
    %c0_2 = arith.constant 0 : index
    %1 = vector.load %arg2[%c0_1, %c0_2] : memref<32x64xf32, #tpu.memory_space<vmem>>, vector<32x64xf32>
    %cst = arith.constant dense<0.000000e+00> : vector<16x64xf32>
    %2 = tpu.matmul %0, %1, %cst {dimension_numbers = #tpu.dot_dimension_numbers<[1], [0], [0], [1], [0, 0, 1, 1], [], []>} : vector<16x32xf32>, vector<32x64xf32>, vector<16x64xf32> -> vector<16x64xf32>
    %c0_3 = arith.constant 0 : index
    %c0_4 = arith.constant 0 : index
    %3 = vector.load %arg3[%c0_3, %c0_4] : memref<1x64xf32, #tpu.memory_space<vmem>>, vector<1x64xf32>
    %4 = vector.broadcast %3 : vector<1x64xf32> to vector<16x64xf32>
    %5 = arith.addf %2, %4 : vector<16x64xf32>
    %cst_5 = arith.constant 0.000000e+00 : f32
    %6 = vector.broadcast %cst_5 : f32 to vector<16x64xf32>
    %7 = arith.maximumf %5, %6 : vector<16x64xf32>
    %c0_6 = arith.constant 0 : index
    %c0_7 = arith.constant 0 : index
    %8 = vector.load %arg4[%c0_6, %c0_7] : memref<64x32xf32, #tpu.memory_space<vmem>>, vector<64x32xf32>
    %cst_8 = arith.constant dense<0.000000e+00> : vector<16x32xf32>
    %9 = tpu.matmul %7, %8, %cst_8 {dimension_numbers = #tpu.dot_dimension_numbers<[1], [0], [0], [1], [0, 0, 1, 1], [], []>} : vector<16x64xf32>, vector<64x32xf32>, vector<16x32xf32> -> vector<16x32xf32>
    %c0_9 = arith.constant 0 : index
    %c0_10 = arith.constant 0 : index
    %10 = vector.load %arg5[%c0_9, %c0_10] : memref<1x32xf32, #tpu.memory_space<vmem>>, vector<1x32xf32>
    %11 = vector.broadcast %10 : vector<1x32xf32> to vector<16x32xf32>
    %12 = arith.addf %9, %11 : vector<16x32xf32>
    %13 = arith.addf %12, %0 : vector<16x32xf32>
    %cst_11 = arith.constant dense<0.000000e+00> : vector<16xf32>
    %14 = vector.multi_reduction <add>, %13, %cst_11 [1] : vector<16x32xf32> to vector<16xf32>
    %15 = vector.shape_cast %14 : vector<16xf32> to vector<16x1xf32>
    %cst_12 = arith.constant 3.200000e+01 : f32
    %16 = vector.broadcast %cst_12 : f32 to vector<16x1xf32>
    %17 = arith.divf %15, %16 : vector<16x1xf32>
    %18 = vector.broadcast %17 : vector<16x1xf32> to vector<16x32xf32>
    %19 = arith.subf %13, %18 : vector<16x32xf32>
    %20 = arith.mulf %19, %19 : vector<16x32xf32>
    %cst_13 = arith.constant dense<0.000000e+00> : vector<16xf32>
    %21 = vector.multi_reduction <add>, %20, %cst_13 [1] : vector<16x32xf32> to vector<16xf32>
    %22 = vector.shape_cast %21 : vector<16xf32> to vector<16x1xf32>
    %cst_14 = arith.constant 3.200000e+01 : f32
    %23 = vector.broadcast %cst_14 : f32 to vector<16x1xf32>
    %24 = arith.divf %22, %23 : vector<16x1xf32>
    %cst_15 = arith.constant 9.99999974E-6 : f32
    %25 = vector.broadcast %cst_15 : f32 to vector<16x1xf32>
    %26 = arith.addf %24, %25 : vector<16x1xf32>
    %27 = math.rsqrt %26 : vector<16x1xf32>
    %28 = vector.broadcast %27 : vector<16x1xf32> to vector<16x32xf32>
    %29 = arith.mulf %19, %28 : vector<16x32xf32>
    %c0_16 = arith.constant 0 : index
    %c0_17 = arith.constant 0 : index
    %30 = vector.load %arg6[%c0_16, %c0_17] : memref<1x32xf32, #tpu.memory_space<vmem>>, vector<1x32xf32>
    %31 = vector.broadcast %30 : vector<1x32xf32> to vector<16x32xf32>
    %32 = arith.mulf %29, %31 : vector<16x32xf32>
    %c0_18 = arith.constant 0 : index
    %c0_19 = arith.constant 0 : index
    %33 = vector.load %arg7[%c0_18, %c0_19] : memref<1x32xf32, #tpu.memory_space<vmem>>, vector<1x32xf32>
    %34 = vector.broadcast %33 : vector<1x32xf32> to vector<16x32xf32>
    %35 = arith.addf %32, %34 : vector<16x32xf32>
    %c0_20 = arith.constant 0 : index
    %c0_21 = arith.constant 0 : index
    %36 = vector.load %arg8[%c0_20, %c0_21] : memref<16x32xf32, #tpu.memory_space<vmem>>, vector<16x32xf32>
    tpu.vector_store %arg8[%c0_20, %c0_21], %35 {strides = array<i32>} : memref<16x32xf32, #tpu.memory_space<vmem>>, vector<16x32xf32>,
    return
  }
  func.func @transform_0(%arg0: i32) -> (i32, i32) {
    %c0_i32 = arith.constant 0 : i32
    %c0_i32_0 = arith.constant 0 : i32
    return %arg0, %c0_i32 : i32, i32
  }
  func.func @transform_1(%arg0: i32) -> (i32, i32) {
    %c0_i32 = arith.constant 0 : i32
    %c0_i32_0 = arith.constant 0 : i32
    %c0_i32_1 = arith.constant 0 : i32
    return %c0_i32, %c0_i32_0 : i32, i32
  }
  func.func @transform_2(%arg0: i32) -> (i32, i32) {
    %c0_i32 = arith.constant 0 : i32
    %c0_i32_0 = arith.constant 0 : i32
    %c0_i32_1 = arith.constant 0 : i32
    return %c0_i32, %c0_i32_0 : i32, i32
  }
  func.func @transform_3(%arg0: i32) -> (i32, i32) {
    %c0_i32 = arith.constant 0 : i32
    %c0_i32_0 = arith.constant 0 : i32
    %c0_i32_1 = arith.constant 0 : i32
    return %c0_i32, %c0_i32_0 : i32, i32
  }
  func.func @transform_4(%arg0: i32) -> (i32, i32) {
    %c0_i32 = arith.constant 0 : i32
    %c0_i32_0 = arith.constant 0 : i32
    %c0_i32_1 = arith.constant 0 : i32
    return %c0_i32, %c0_i32_0 : i32, i32
  }
  func.func @transform_5(%arg0: i32) -> (i32, i32) {
    %c0_i32 = arith.constant 0 : i32
    %c0_i32_0 = arith.constant 0 : i32
    %c0_i32_1 = arith.constant 0 : i32
    return %c0_i32, %c0_i32_0 : i32, i32
  }
  func.func @transform_6(%arg0: i32) -> (i32, i32) {
    %c0_i32 = arith.constant 0 : i32
    %c0_i32_0 = arith.constant 0 : i32
    %c0_i32_1 = arith.constant 0 : i32
    return %c0_i32, %c0_i32_0 : i32, i32
  }
  func.func @transform_7(%arg0: i32) -> (i32, i32) {
    %c0_i32 = arith.constant 0 : i32
    %c0_i32_0 = arith.constant 0 : i32
    return %arg0, %c0_i32 : i32, i32
  }
}

module attributes {stable_mosaic.version = 11 : i64} {
  func.func @_ln_kernel(%arg0: i32, %arg1: memref<16x32xf32, #tpu.memory_space<vmem>>, %arg2: memref<1x32xf32, #tpu.memory_space<vmem>>, %arg3: memref<1x32xf32, #tpu.memory_space<vmem>>, %arg4: memref<16x32xf32, #tpu.memory_space<vmem>>) attributes {dimension_semantics = [#tpu.dimension_semantics<parallel>], iteration_bounds = array<i64: 1>, scalar_prefetch = 0 : i64, scratch_operands = 0 : i64, tpu.core_type = #tpu.core_type<tc>, window_params = [{transform_indices = @transform_0, window_bounds = array<i64: 16, 32>}, {pipeline_mode = #tpu.pipeline_mode<synchronous>, transform_indices = @transform_1, window_bounds = array<i64: 1, 32>}, {pipeline_mode = #tpu.pipeline_mode<synchronous>, transform_indices = @transform_2, window_bounds = array<i64: 1, 32>}, {transform_indices = @transform_3, window_bounds = array<i64: 16, 32>}]} {
    %c0 = arith.constant 0 : index
    %c0_0 = arith.constant 0 : index
    %0 = vector.load %arg1[%c0, %c0_0] : memref<16x32xf32, #tpu.memory_space<vmem>>, vector<16x32xf32>
    %cst = arith.constant dense<0.000000e+00> : vector<16xf32>
    %1 = vector.multi_reduction <add>, %0, %cst [1] : vector<16x32xf32> to vector<16xf32>
    %2 = vector.shape_cast %1 : vector<16xf32> to vector<16x1xf32>
    %cst_1 = arith.constant 3.200000e+01 : f32
    %3 = vector.broadcast %cst_1 : f32 to vector<16x1xf32>
    %4 = arith.divf %2, %3 : vector<16x1xf32>
    %5 = vector.broadcast %4 : vector<16x1xf32> to vector<16x32xf32>
    %6 = arith.subf %0, %5 : vector<16x32xf32>
    %7 = arith.mulf %6, %6 : vector<16x32xf32>
    %cst_2 = arith.constant dense<0.000000e+00> : vector<16xf32>
    %8 = vector.multi_reduction <add>, %7, %cst_2 [1] : vector<16x32xf32> to vector<16xf32>
    %9 = vector.shape_cast %8 : vector<16xf32> to vector<16x1xf32>
    %cst_3 = arith.constant 3.200000e+01 : f32
    %10 = vector.broadcast %cst_3 : f32 to vector<16x1xf32>
    %11 = arith.divf %9, %10 : vector<16x1xf32>
    %cst_4 = arith.constant 9.99999974E-6 : f32
    %12 = vector.broadcast %cst_4 : f32 to vector<16x1xf32>
    %13 = arith.addf %11, %12 : vector<16x1xf32>
    %14 = math.rsqrt %13 : vector<16x1xf32>
    %15 = vector.broadcast %14 : vector<16x1xf32> to vector<16x32xf32>
    %16 = arith.mulf %6, %15 : vector<16x32xf32>
    %c0_5 = arith.constant 0 : index
    %c0_6 = arith.constant 0 : index
    %17 = vector.load %arg2[%c0_5, %c0_6] : memref<1x32xf32, #tpu.memory_space<vmem>>, vector<1x32xf32>
    %18 = vector.broadcast %17 : vector<1x32xf32> to vector<16x32xf32>
    %19 = arith.mulf %16, %18 : vector<16x32xf32>
    %c0_7 = arith.constant 0 : index
    %c0_8 = arith.constant 0 : index
    %20 = vector.load %arg3[%c0_7, %c0_8] : memref<1x32xf32, #tpu.memory_space<vmem>>, vector<1x32xf32>
    %21 = vector.broadcast %20 : vector<1x32xf32> to vector<16x32xf32>
    %22 = arith.addf %19, %21 : vector<16x32xf32>
    %c0_9 = arith.constant 0 : index
    %c0_10 = arith.constant 0 : index
    %23 = vector.load %arg4[%c0_9, %c0_10] : memref<16x32xf32, #tpu.memory_space<vmem>>, vector<16x32xf32>
    tpu.vector_store %arg4[%c0_9, %c0_10], %22 {strides = array<i32>} : memref<16x32xf32, #tpu.memory_space<vmem>>, vector<16x32xf32>,
    return
  }
  func.func @transform_0(%arg0: i32) -> (i32, i32) {
    %c0_i32 = arith.constant 0 : i32
    %c0_i32_0 = arith.constant 0 : i32
    return %arg0, %c0_i32 : i32, i32
  }
  func.func @transform_1(%arg0: i32) -> (i32, i32) {
    %c0_i32 = arith.constant 0 : i32
    %c0_i32_0 = arith.constant 0 : i32
    %c0_i32_1 = arith.constant 0 : i32
    return %c0_i32, %c0_i32_0 : i32, i32
  }
  func.func @transform_2(%arg0: i32) -> (i32, i32) {
    %c0_i32 = arith.constant 0 : i32
    %c0_i32_0 = arith.constant 0 : i32
    %c0_i32_1 = arith.constant 0 : i32
    return %c0_i32, %c0_i32_0 : i32, i32
  }
  func.func @transform_3(%arg0: i32) -> (i32, i32) {
    %c0_i32 = arith.constant 0 : i32
    %c0_i32_0 = arith.constant 0 : i32
    return %arg0, %c0_i32 : i32, i32
  }
}

module attributes {stable_mosaic.version = 11 : i64} {
  func.func @_linear_kernel(%arg0: i32, %arg1: memref<16x32xf32, #tpu.memory_space<vmem>>, %arg2: memref<32x32xf32, #tpu.memory_space<vmem>>, %arg3: memref<1x32xf32, #tpu.memory_space<vmem>>, %arg4: memref<16x32xf32, #tpu.memory_space<vmem>>) attributes {dimension_semantics = [#tpu.dimension_semantics<parallel>], iteration_bounds = array<i64: 1>, scalar_prefetch = 0 : i64, scratch_operands = 0 : i64, tpu.core_type = #tpu.core_type<tc>, window_params = [{transform_indices = @transform_0, window_bounds = array<i64: 16, 32>}, {pipeline_mode = #tpu.pipeline_mode<synchronous>, transform_indices = @transform_1, window_bounds = array<i64: 32, 32>}, {pipeline_mode = #tpu.pipeline_mode<synchronous>, transform_indices = @transform_2, window_bounds = array<i64: 1, 32>}, {transform_indices = @transform_3, window_bounds = array<i64: 16, 32>}]} {
    %c0 = arith.constant 0 : index
    %c0_0 = arith.constant 0 : index
    %0 = vector.load %arg1[%c0, %c0_0] : memref<16x32xf32, #tpu.memory_space<vmem>>, vector<16x32xf32>
    %c0_1 = arith.constant 0 : index
    %c0_2 = arith.constant 0 : index
    %1 = vector.load %arg2[%c0_1, %c0_2] : memref<32x32xf32, #tpu.memory_space<vmem>>, vector<32x32xf32>
    %cst = arith.constant dense<0.000000e+00> : vector<16x32xf32>
    %2 = tpu.matmul %0, %1, %cst {dimension_numbers = #tpu.dot_dimension_numbers<[1], [0], [0], [1], [0, 0, 1, 1], [], []>} : vector<16x32xf32>, vector<32x32xf32>, vector<16x32xf32> -> vector<16x32xf32>
    %c0_3 = arith.constant 0 : index
    %c0_4 = arith.constant 0 : index
    %3 = vector.load %arg3[%c0_3, %c0_4] : memref<1x32xf32, #tpu.memory_space<vmem>>, vector<1x32xf32>
    %4 = vector.broadcast %3 : vector<1x32xf32> to vector<16x32xf32>
    %5 = arith.addf %2, %4 : vector<16x32xf32>
    %c0_5 = arith.constant 0 : index
    %c0_6 = arith.constant 0 : index
    %6 = vector.load %arg4[%c0_5, %c0_6] : memref<16x32xf32, #tpu.memory_space<vmem>>, vector<16x32xf32>
    tpu.vector_store %arg4[%c0_5, %c0_6], %5 {strides = array<i32>} : memref<16x32xf32, #tpu.memory_space<vmem>>, vector<16x32xf32>,
    return
  }
  func.func @transform_0(%arg0: i32) -> (i32, i32) {
    %c0_i32 = arith.constant 0 : i32
    %c0_i32_0 = arith.constant 0 : i32
    return %arg0, %c0_i32 : i32, i32
  }
  func.func @transform_1(%arg0: i32) -> (i32, i32) {
    %c0_i32 = arith.constant 0 : i32
    %c0_i32_0 = arith.constant 0 : i32
    %c0_i32_1 = arith.constant 0 : i32
    return %c0_i32, %c0_i32_0 : i32, i32
  }
  func.func @transform_2(%arg0: i32) -> (i32, i32) {
    %c0_i32 = arith.constant 0 : i32
    %c0_i32_0 = arith.constant 0 : i32
    %c0_i32_1 = arith.constant 0 : i32
    return %c0_i32, %c0_i32_0 : i32, i32
  }
  func.func @transform_3(%arg0: i32) -> (i32, i32) {
    %c0_i32 = arith.constant 0 : i32
    %c0_i32_0 = arith.constant 0 : i32
    return %arg0, %c0_i32 : i32, i32
  }
}

module attributes {stable_mosaic.version = 11 : i64} {
  func.func @_linear_kernel(%arg0: i32, %arg1: memref<16x32xf32, #tpu.memory_space<vmem>>, %arg2: memref<32x64xf32, #tpu.memory_space<vmem>>, %arg3: memref<1x64xf32, #tpu.memory_space<vmem>>, %arg4: memref<16x64xf32, #tpu.memory_space<vmem>>) attributes {dimension_semantics = [#tpu.dimension_semantics<parallel>], iteration_bounds = array<i64: 1>, scalar_prefetch = 0 : i64, scratch_operands = 0 : i64, tpu.core_type = #tpu.core_type<tc>, window_params = [{transform_indices = @transform_0, window_bounds = array<i64: 16, 32>}, {pipeline_mode = #tpu.pipeline_mode<synchronous>, transform_indices = @transform_1, window_bounds = array<i64: 32, 64>}, {pipeline_mode = #tpu.pipeline_mode<synchronous>, transform_indices = @transform_2, window_bounds = array<i64: 1, 64>}, {transform_indices = @transform_3, window_bounds = array<i64: 16, 64>}]} {
    %c0 = arith.constant 0 : index
    %c0_0 = arith.constant 0 : index
    %0 = vector.load %arg1[%c0, %c0_0] : memref<16x32xf32, #tpu.memory_space<vmem>>, vector<16x32xf32>
    %c0_1 = arith.constant 0 : index
    %c0_2 = arith.constant 0 : index
    %1 = vector.load %arg2[%c0_1, %c0_2] : memref<32x64xf32, #tpu.memory_space<vmem>>, vector<32x64xf32>
    %cst = arith.constant dense<0.000000e+00> : vector<16x64xf32>
    %2 = tpu.matmul %0, %1, %cst {dimension_numbers = #tpu.dot_dimension_numbers<[1], [0], [0], [1], [0, 0, 1, 1], [], []>} : vector<16x32xf32>, vector<32x64xf32>, vector<16x64xf32> -> vector<16x64xf32>
    %c0_3 = arith.constant 0 : index
    %c0_4 = arith.constant 0 : index
    %3 = vector.load %arg3[%c0_3, %c0_4] : memref<1x64xf32, #tpu.memory_space<vmem>>, vector<1x64xf32>
    %4 = vector.broadcast %3 : vector<1x64xf32> to vector<16x64xf32>
    %5 = arith.addf %2, %4 : vector<16x64xf32>
    %c0_5 = arith.constant 0 : index
    %c0_6 = arith.constant 0 : index
    %6 = vector.load %arg4[%c0_5, %c0_6] : memref<16x64xf32, #tpu.memory_space<vmem>>, vector<16x64xf32>
    tpu.vector_store %arg4[%c0_5, %c0_6], %5 {strides = array<i32>} : memref<16x64xf32, #tpu.memory_space<vmem>>, vector<16x64xf32>,
    return
  }
  func.func @transform_0(%arg0: i32) -> (i32, i32) {
    %c0_i32 = arith.constant 0 : i32
    %c0_i32_0 = arith.constant 0 : i32
    return %arg0, %c0_i32 : i32, i32
  }
  func.func @transform_1(%arg0: i32) -> (i32, i32) {
    %c0_i32 = arith.constant 0 : i32
    %c0_i32_0 = arith.constant 0 : i32
    %c0_i32_1 = arith.constant 0 : i32
    return %c0_i32, %c0_i32_0 : i32, i32
  }
  func.func @transform_2(%arg0: i32) -> (i32, i32) {
    %c0_i32 = arith.constant 0 : i32
    %c0_i32_0 = arith.constant 0 : i32
    %c0_i32_1 = arith.constant 0 : i32
    return %c0_i32, %c0_i32_0 : i32, i32
  }
  func.func @transform_3(%arg0: i32) -> (i32, i32) {
    %c0_i32 = arith.constant 0 : i32
    %c0_i32_0 = arith.constant 0 : i32
    return %arg0, %c0_i32 : i32, i32
  }
}

module attributes {stable_mosaic.version = 11 : i64} {
  func.func @_linear_kernel(%arg0: i32, %arg1: memref<16x32xf32, #tpu.memory_space<vmem>>, %arg2: memref<32x1xf32, #tpu.memory_space<vmem>>, %arg3: memref<1x1xf32, #tpu.memory_space<vmem>>, %arg4: memref<16x1xf32, #tpu.memory_space<vmem>>) attributes {dimension_semantics = [#tpu.dimension_semantics<parallel>], iteration_bounds = array<i64: 1>, scalar_prefetch = 0 : i64, scratch_operands = 0 : i64, tpu.core_type = #tpu.core_type<tc>, window_params = [{transform_indices = @transform_0, window_bounds = array<i64: 16, 32>}, {pipeline_mode = #tpu.pipeline_mode<synchronous>, transform_indices = @transform_1, window_bounds = array<i64: 32, 1>}, {pipeline_mode = #tpu.pipeline_mode<synchronous>, transform_indices = @transform_2, window_bounds = array<i64: 1, 1>}, {transform_indices = @transform_3, window_bounds = array<i64: 16, 1>}]} {
    %c0 = arith.constant 0 : index
    %c0_0 = arith.constant 0 : index
    %0 = vector.load %arg1[%c0, %c0_0] : memref<16x32xf32, #tpu.memory_space<vmem>>, vector<16x32xf32>
    %c0_1 = arith.constant 0 : index
    %c0_2 = arith.constant 0 : index
    %1 = vector.load %arg2[%c0_1, %c0_2] : memref<32x1xf32, #tpu.memory_space<vmem>>, vector<32x1xf32>
    %cst = arith.constant dense<0.000000e+00> : vector<16x1xf32>
    %2 = tpu.matmul %0, %1, %cst {dimension_numbers = #tpu.dot_dimension_numbers<[1], [0], [0], [1], [0, 0, 1, 1], [], []>} : vector<16x32xf32>, vector<32x1xf32>, vector<16x1xf32> -> vector<16x1xf32>
    %c0_3 = arith.constant 0 : index
    %c0_4 = arith.constant 0 : index
    %3 = vector.load %arg3[%c0_3, %c0_4] : memref<1x1xf32, #tpu.memory_space<vmem>>, vector<1x1xf32>
    %4 = vector.broadcast %3 : vector<1x1xf32> to vector<16x1xf32>
    %5 = arith.addf %2, %4 : vector<16x1xf32>
    %c0_5 = arith.constant 0 : index
    %c0_6 = arith.constant 0 : index
    %6 = vector.load %arg4[%c0_5, %c0_6] : memref<16x1xf32, #tpu.memory_space<vmem>>, vector<16x1xf32>
    tpu.vector_store %arg4[%c0_5, %c0_6], %5 {strides = array<i32>} : memref<16x1xf32, #tpu.memory_space<vmem>>, vector<16x1xf32>,
    return
  }
  func.func @transform_0(%arg0: i32) -> (i32, i32) {
    %c0_i32 = arith.constant 0 : i32
    %c0_i32_0 = arith.constant 0 : i32
    return %arg0, %c0_i32 : i32, i32
  }
  func.func @transform_1(%arg0: i32) -> (i32, i32) {
    %c0_i32 = arith.constant 0 : i32
    %c0_i32_0 = arith.constant 0 : i32
    %c0_i32_1 = arith.constant 0 : i32
    return %c0_i32, %c0_i32_0 : i32, i32
  }
  func.func @transform_2(%arg0: i32) -> (i32, i32) {
    %c0_i32 = arith.constant 0 : i32
    %c0_i32_0 = arith.constant 0 : i32
    %c0_i32_1 = arith.constant 0 : i32
    return %c0_i32, %c0_i32_0 : i32, i32
  }
  func.func @transform_3(%arg0: i32) -> (i32, i32) {
    %c0_i32 = arith.constant 0 : i32
    %c0_i32_0 = arith.constant 0 : i32
    return %arg0, %c0_i32 : i32, i32
  }
}

</mosaic_0001>

<llo_original>
// kernel: transformer_autoencoder_forward.29
$region0: #{transformer_autoencoder_forward.29}
  #allocation0 [shape = 'u32[]', space=smem, size = 0x4, offset = 0x4, fixed_abs, tag = 'smem constant byte address 0x4 - core index']
  #allocation1 [shape = 'u32[144,128]{1,0:T(1,128)}', space=vmem, size = 0x12000, scoped, tag = 'internal scratch']
  %s0 = inlined_call_operand.vmem [shape: f32[16,32], index: 0, kind: input, shape index: {}]
  %s1 = inlined_call_operand.vmem [shape: f32[32,96], index: 1, kind: input, shape index: {}]
  %s2 = inlined_call_operand.vmem [shape: f32[1,96], index: 2, kind: input, shape index: {}]
  %s3 = inlined_call_operand.vmem [shape: f32[16,96], index: 3, kind: output, shape index: {}]
  %s4 = sld [smem:[#allocation0]]
  $region22: #{transformer_autoencoder_forward.29} parent=0
    _
  %s6 = ssub.s32 1, %s4
  %s7 = scalar_select 0, %s6, %s4
  // Predicated region
  $region2: #{transformer_autoencoder_forward.29} parent=0 // pred_check
    _
  $region3: #{transformer_autoencoder_forward.29} parent=0 // pred_check_branch
    %9 = sbr.rel (0) target = $region5
  $region4: #{transformer_autoencoder_forward.29} parent=0 // pred_region
    _
  $region5: #{transformer_autoencoder_forward.29} parent=0 // pred_fallthru
    _
  // Predicated region
  $region6: #{transformer_autoencoder_forward.29} parent=0 // pred_check
    _
  $region7: #{transformer_autoencoder_forward.29} parent=0 // pred_check_branch
    %11 = sbr.rel (0) target = $region9
  $region8: #{transformer_autoencoder_forward.29} parent=0 // pred_region
    _
  $region9: #{transformer_autoencoder_forward.29} parent=0 // pred_fallthru
    _
  // Predicated region
  $region10: #{transformer_autoencoder_forward.29} parent=0 // pred_check
    _
  $region11: #{transformer_autoencoder_forward.29} parent=0 // pred_check_branch
    %13 = sbr.rel (0) target = $region13
  $region12: #{transformer_autoencoder_forward.29} parent=0 // pred_region
    _
  $region13: #{transformer_autoencoder_forward.29} parent=0 // pred_fallthru
    _
  %v14 = vld [vmem:[%s0] sm:$0xff]
  %v15 = vld [vmem:[%s0 + $0x8] sm:$0xff]
  %v16 = vld [vmem:[%s1] sm:$0xff]
  %v17 = vld [vmem:[%s1 + $0x8] sm:$0xff]
  %v18 = vld [vmem:[%s1 + $0x10] sm:$0xff]
  %v19 = vld [vmem:[%s1 + $0x18] sm:$0xff]
  %v20 = vld [vmem:[%s2] sm:$0x1]
  %v22 = vlaneseq
  %v23 = vshrl.u32 %v22, 7
  %v24 = vsub.s32 0, %v23
  %v25 = vrot.slane %v20, %v24
  %vm27 = vcmask 261120
  %v29 = vsel %vm27, %v14, 0
  %v32 = vsel %vm27, %v15, 0
  %34 = vmatprep.subr.mxu0 0.0
  %35 = vmatpush1.msra.mxu0 0.0
  %36 = vmatprep.subr.mxu0 0.0
  %37 = vmatpush1.msra.mxu0 0.0
  %38 = vmatprep.subr.mxu0 0.0
  %39 = vmatpush1.msra.mxu0 0.0
  %40 = vmatprep.subr.mxu0 0.0
  %41 = vmatpush1.msra.mxu0 0.0
  %42 = vmatprep.subr.mxu0 0.0
  %43 = vmatpush1.msra.mxu0 0.0
  %44 = vmatprep.subr.mxu0 0.0
  %45 = vmatpush1.msra.mxu0 0.0
  %46 = vmatprep.subr.mxu0 0.0
  %47 = vmatpush1.msra.mxu0 0.0
  %48 = vmatprep.subr.mxu0 0.0
  %49 = vmatpush1.msra.mxu0 0.0
  %50 = vmatprep.subr.mxu0 0.0
  %51 = vmatpush1.msra.mxu0 0.0
  %52 = vmatprep.subr.mxu0 0.0
  %53 = vmatpush1.msra.mxu0 0.0
  %54 = vmatprep.subr.mxu0 0.0
  %55 = vmatpush1.msra.mxu0 0.0
  %56 = vmatprep.subr.mxu0 0.0
  %57 = vmatpush1.msra.mxu0 0.0
  %58 = vmatprep.subr.mxu0 0.0
  %59 = vmatpush1.msra.mxu0 %v19
  %60 = vmatprep.subr.mxu0 0.0
  %61 = vmatpush1.msra.mxu0 %v18
  %62 = vmatprep.subr.mxu0 0.0
  %63 = vmatpush1.msra.mxu0 %v17
  %64 = vmatprep.subr.mxu0 0.0
  %65 = vmatpush1.msra.mxu0 %v16
  %66 = vmatprep.subr.mxu0 0.0
  %67 = vmatpush2.msra.mxu0 0.0
  %68 = vmatprep.subr.mxu0 0.0
  %69 = vmatpush2.msra.mxu0 0.0
  %70 = vmatprep.subr.mxu0 0.0
  %71 = vmatpush2.msra.mxu0 0.0
  %72 = vmatprep.subr.mxu0 0.0
  %73 = vmatpush2.msra.mxu0 0.0
  %74 = vmatprep.subr.mxu0 0.0
  %75 = vmatpush2.msra.mxu0 0.0
  %76 = vmatprep.subr.mxu0 0.0
  %77 = vmatpush2.msra.mxu0 0.0
  %78 = vmatprep.subr.mxu0 0.0
  %79 = vmatpush2.msra.mxu0 0.0
  %80 = vmatprep.subr.mxu0 0.0
  %81 = vmatpush2.msra.mxu0 0.0
  %82 = vmatprep.subr.mxu0 0.0
  %83 = vmatpush2.msra.mxu0 0.0
  %84 = vmatprep.subr.mxu0 0.0
  %85 = vmatpush2.msra.mxu0 0.0
  %86 = vmatprep.subr.mxu0 0.0
  %87 = vmatpush2.msra.mxu0 0.0
  %88 = vmatprep.subr.mxu0 0.0
  %89 = vmatpush2.msra.mxu0 0.0
  %90 = vmatprep.subr.mxu0 0.0
  %91 = vmatpush2.msra.mxu0 0.0
  %92 = vmatprep.subr.mxu0 0.0
  %93 = vmatpush2.msra.mxu0 0.0
  %94 = vmatprep.subr.mxu0 0.0
  %95 = vmatpush2.msra.mxu0 0.0
  %96 = vmatprep.subr.mxu0 0.0
  %97 = vmatpush2.msra.mxu0 0.0
  %98 = vmatprep.mubr.f32.mxu0 0.0
  %99 = vmatmul.mubr.f32.gmra.mxu0 %v29
  %v100 = vpop.f32.mrf.mxu0
  %v101 = vadd.f32 %v25, %v100
  %v102 = vpop.f32.mrf.mxu0
  %103 = vmatprep.mubr.f32.mxu0 0.0
  %104 = vmatmul.mubr.f32.gmra.mxu0 %v32
  %v105 = vpop.f32.mrf.mxu0
  %v106 = vadd.f32 %v25, %v105
  %v107 = vpop.f32.mrf.mxu0
  %108 = vdwg.mxu0
  %vm109 = vcmask 785408
  %110 = vst.msk [vmem:[%s3] sm:$0xff] %vm109, %v101
  %111 = vst.msk [vmem:[%s3 + $0x8] sm:$0xff] %vm109, %v106
  // Predicated region
  $region14: #{transformer_autoencoder_forward.29} parent=0 // pred_check
    _
  $region15: #{transformer_autoencoder_forward.29} parent=0 // pred_check_branch
    %113 = sbr.rel (0) target = $region17
  $region16: #{transformer_autoencoder_forward.29} parent=0 // pred_region
    _
  $region17: #{transformer_autoencoder_forward.29} parent=0 // pred_fallthru
    _
  // Predicated region
  $region18: #{transformer_autoencoder_forward.29} parent=0 // pred_check
    _
  $region19: #{transformer_autoencoder_forward.29} parent=0 // pred_check_branch
    %115 = sbr.rel (0) target = $region21
  $region20: #{transformer_autoencoder_forward.29} parent=0 // pred_region
    _
  $region21: #{transformer_autoencoder_forward.29} parent=0 // pred_fallthru
    _

// kernel: transformer_autoencoder_forward.28
$region0: #{transformer_autoencoder_forward.28}
  #allocation0 [shape = 'u32[]', space=smem, size = 0x4, offset = 0x4, fixed_abs, tag = 'smem constant byte address 0x4 - core index']
  #allocation1 [shape = 'u32[144,128]{1,0:T(1,128)}', space=vmem, size = 0x12000, scoped, tag = 'internal scratch']
  %s0 = inlined_call_operand.vmem [shape: f32[2,8,1], index: 0, kind: input, shape index: {}]
  %s1 = inlined_call_operand.vmem [shape: f32[1,32], index: 1, kind: input, shape index: {}]
  %s2 = inlined_call_operand.vmem [shape: f32[2,1,32], index: 2, kind: input, shape index: {}]
  %s3 = inlined_call_operand.vmem [shape: f32[2,8,32], index: 3, kind: output, shape index: {}]
  %s4 = sld [smem:[#allocation0]]
  $region45: #{transformer_autoencoder_forward.28} parent=0
    _
  %s6 = ssub.s32 1, %s4
  %s7 = scalar_select 0, %s6, %s4
  loop: start=0, step=1, limit=4
  $region2: #{transformer_autoencoder_forward.28} parent=0 // loop_pre_header
    _
  $region3: #{transformer_autoencoder_forward.28} parent=0 // loop_header
    %s9 = sphi 0, %s13
    %p10 = scmp.ge.s32.totalorder %s9, 4
    %s19 = sphi 0, %s21
    %s22 = sphi 0, %s19
    %s23 = sphi 0, %s22
    %s39 = sphi 0, %s23
    %s43 = sphi 0, %s43
    %s45 = sphi 0, %s43
    %s46 = sphi 0, %s45
    %s60 = sphi 0, %s46
    %s66 = sphi 0, %s68
    %s69 = sphi 0, %s66
    %s70 = sphi 0, %s69
    %s86 = sphi 0, %s70
    %s92 = sphi 0, %s94
    %s95 = sphi 0, %s92
    %s96 = sphi 0, %s95
    %s112 = sphi 0, %s96
  $region4: #{transformer_autoencoder_forward.28} parent=0 // loop_header_branch
    %12 = sbr.rel (%p10) target = $region8
  $region5: #{transformer_autoencoder_forward.28} parent=0 // loop_body
    %s14 = ssub.s32 %s9, 1
    %s15 = ssub.s32 %s9, 2
    %s16 = sadd.s32 %s9, 1
    %s17 = ssub.s32 %s9, %s16
    %p18 = scmp.eq.s32.totalorder %s17, 0
    %s20 = sadd.s32 %s19, 1
    %s21 = scalar_select %p18, %s19, %s20
    %p24 = pneg %p18
    %p25 = scmp.eq.s32.totalorder %s9, 1
    %p26 = por %p24, %p25
    %p27 = scmp.ne.s32.totalorder %s19, %s22
    %p28 = scmp.eq.s32.totalorder %s9, 0
    %p29 = por %p27, %p28
    %p30 = scmp.ne.s32.totalorder %s19, %s22
    %p31 = scmp.eq.s32.totalorder %s14, 1
    %p32 = por %p30, %p31
    %p33 = scmp.ne.s32.totalorder %s22, %s23
    %p34 = scmp.eq.s32.totalorder %s14, 0
    %p35 = por %p33, %p34
    %p36 = scmp.ne.s32.totalorder %s22, %s23
    %p37 = scmp.eq.s32.totalorder %s15, 1
    %p38 = por %p36, %p37
    %p40 = scmp.ne.s32.totalorder %s23, %s39
    %p41 = scmp.eq.s32.totalorder %s15, 0
    %p42 = por %p40, %p41
    %s44 = sadd.s32 %s43, 1
    %p47 = scmp.eq.s32.totalorder %s9, 1
    %p48 = scmp.ne.s32.totalorder %s43, %s45
    %p49 = scmp.eq.s32.totalorder %s9, 0
    %p50 = por %p48, %p49
    %p51 = scmp.ne.s32.totalorder %s43, %s45
    %p52 = scmp.eq.s32.totalorder %s14, 1
    %p53 = por %p51, %p52
    %p54 = scmp.ne.s32.totalorder %s45, %s46
    %p55 = scmp.eq.s32.totalorder %s14, 0
    %p56 = por %p54, %p55
    %p57 = scmp.ne.s32.totalorder %s45, %s46
    %p58 = scmp.eq.s32.totalorder %s15, 1
    %p59 = por %p57, %p58
    %p61 = scmp.ne.s32.totalorder %s46, %s60
    %p62 = scmp.eq.s32.totalorder %s15, 0
    %p63 = por %p61, %p62
    %s64 = ssub.s32 %s9, %s16
    %p65 = scmp.eq.s32.totalorder %s64, 0
    %s67 = sadd.s32 %s66, 1
    %s68 = scalar_select %p65, %s66, %s67
    %p71 = pneg %p65
    %p72 = scmp.eq.s32.totalorder %s9, 1
    %p73 = por %p71, %p72
    %p74 = scmp.ne.s32.totalorder %s66, %s69
    %p75 = scmp.eq.s32.totalorder %s9, 0
    %p76 = por %p74, %p75
    %p77 = scmp.ne.s32.totalorder %s66, %s69
    %p78 = scmp.eq.s32.totalorder %s14, 1
    %p79 = por %p77, %p78
    %p80 = scmp.ne.s32.totalorder %s69, %s70
    %p81 = scmp.eq.s32.totalorder %s14, 0
    %p82 = por %p80, %p81
    %p83 = scmp.ne.s32.totalorder %s69, %s70
    %p84 = scmp.eq.s32.totalorder %s15, 1
    %p85 = por %p83, %p84
    %p87 = scmp.ne.s32.totalorder %s70, %s86
    %p88 = scmp.eq.s32.totalorder %s15, 0
    %p89 = por %p87, %p88
    %s90 = ssub.s32 %s9, %s16
    %p91 = scmp.eq.s32.totalorder %s90, 0
    %s93 = sadd.s32 %s92, 1
    %s94 = scalar_select %p91, %s92, %s93
    %p97 = pneg %p91
    %p98 = scmp.eq.s32.totalorder %s9, 1
    %p99 = por %p97, %p98
    %p100 = scmp.ne.s32.totalorder %s92, %s95
    %p101 = scmp.eq.s32.totalorder %s9, 0
    %p102 = por %p100, %p101
    %p103 = scmp.ne.s32.totalorder %s92, %s95
    %p104 = scmp.eq.s32.totalorder %s14, 1
    %p105 = por %p103, %p104
    %p106 = scmp.ne.s32.totalorder %s95, %s96
    %p107 = scmp.eq.s32.totalorder %s14, 0
    %p108 = por %p106, %p107
    %p109 = scmp.ne.s32.totalorder %s95, %s96
    %p110 = scmp.eq.s32.totalorder %s15, 1
    %p111 = por %p109, %p110
    %p113 = scmp.ne.s32.totalorder %s96, %s112
    %p114 = scmp.eq.s32.totalorder %s15, 0
    %p115 = por %p113, %p114
    %p116 = scmp.le.s32.totalorder 1, %s9
    %p117 = scmp.lt.s32.totalorder %s9, 3
    %p118 = pnand %p116, %p117
    %p119 = pneg %p118
    // Predicated region
    $region9: #{transformer_autoencoder_forward.28} parent=5 // pred_check
      _
    $region10: #{transformer_autoencoder_forward.28} parent=5 // pred_check_branch
      %121 = sbr.rel (%p118) target = $region12
    $region11: #{transformer_autoencoder_forward.28} parent=5 // pred_region
      %s122 = ssub.s32 %s9, 1
      // Predicated region
      $region13: #{transformer_autoencoder_forward.28} parent=11 // pred_check
        %p123 = pneg %p56
      $region14: #{transformer_autoencoder_forward.28} parent=11 // pred_check_branch
        %125 = sbr.rel (%p123) target = $region16
      $region15: #{transformer_autoencoder_forward.28} parent=11 // pred_region
        _
      $region16: #{transformer_autoencoder_forward.28} parent=11 // pred_fallthru
        _
    $region12: #{transformer_autoencoder_forward.28} parent=5 // pred_fallthru
      _
    %p126 = scmp.lt.s32.totalorder %s9, 2
    // Predicated region
    $region17: #{transformer_autoencoder_forward.28} parent=5 // pred_check
      %p127 = pneg %p126
    $region18: #{transformer_autoencoder_forward.28} parent=5 // pred_check_branch
      %129 = sbr.rel (%p127) target = $region20
    $region19: #{transformer_autoencoder_forward.28} parent=5 // pred_region
      // Predicated region
      $region21: #{transformer_autoencoder_forward.28} parent=19 // pred_check
        %p130 = pneg %p29
      $region22: #{transformer_autoencoder_forward.28} parent=19 // pred_check_branch
        %132 = sbr.rel (%p130) target = $region24
      $region23: #{transformer_autoencoder_forward.28} parent=19 // pred_region
        %p133 = scmp.lt.s32.totalorder %s9, 1
        %s134 = scalar_select %p133, %s9, 1
        %s135 = smul.addr %s134, 8
        %s136 = scalar_lea.vmem %s0, %s135
      $region24: #{transformer_autoencoder_forward.28} parent=19 // pred_fallthru
        _
      // Predicated region
      $region25: #{transformer_autoencoder_forward.28} parent=19 // pred_check
        %p137 = pneg %p76
      $region26: #{transformer_autoencoder_forward.28} parent=19 // pred_check_branch
        %139 = sbr.rel (%p137) target = $region28
      $region27: #{transformer_autoencoder_forward.28} parent=19 // pred_region
        %p140 = scmp.lt.s32.totalorder %s9, 1
        %s141 = scalar_select %p140, %s9, 1
        %s142 = scalar_lea.vmem %s2, %s141
      $region28: #{transformer_autoencoder_forward.28} parent=19 // pred_fallthru
        _
    $region20: #{transformer_autoencoder_forward.28} parent=5 // pred_fallthru
      _
    %p143 = scmp.le.s32.totalorder 1, %s9
    %p144 = scmp.lt.s32.totalorder %s9, 3
    %p145 = pnand %p143, %p144
    %p146 = pneg %p145
    // Predicated region
    $region29: #{transformer_autoencoder_forward.28} parent=5 // pred_check
      _
    $region30: #{transformer_autoencoder_forward.28} parent=5 // pred_check_branch
      %148 = sbr.rel (%p145) target = $region32
    $region31: #{transformer_autoencoder_forward.28} parent=5 // pred_region
      %s149 = ssub.s32 %s9, 1
      %p150 = scmp.lt.s32.totalorder %s14, 1
      %s151 = scalar_select %p150, %s14, 1
      %s152 = smul.addr %s151, 8
      %s153 = scalar_lea.vmem %s0, %s152
      %p154 = pneg %p35
      %p155 = pneg %p32
      %p156 = pneg %p56
      %p157 = pneg %p53
      %p158 = scmp.lt.s32.totalorder %s14, 1
      %s159 = scalar_select %p158, %s14, 1
      %s160 = scalar_lea.vmem %s2, %s159
      %p161 = pneg %p82
      %p162 = pneg %p79
      %p163 = pneg %p108
      %p164 = pneg %p105
      %p165 = scmp.lt.s32.totalorder %s14, 1
      %s166 = scalar_select %p165, %s14, 1
      %s167 = smul.addr %s166, 8
      %s168 = scalar_lea.vmem %s3, %s167
      %p169 = scmp.lt.s32.totalorder %s14, 1
      %s170 = scalar_select %p169, %s14, 1
      %s171 = smul.addr %s170, 8
      %s172 = scalar_lea.vmem %s0, %s171
      %p173 = scmp.lt.s32.totalorder %s14, 1
      %s174 = scalar_select %p173, %s14, 1
      %s175 = scalar_lea.vmem %s2, %s174
      %p176 = scmp.lt.s32.totalorder %s14, 1
      %s177 = scalar_select %p176, %s14, 1
      %s178 = smul.addr %s177, 8
      %s179 = scalar_lea.vmem %s3, %s178
      %v180 = vld [vmem:[%s172] sm:$0xff]
      %v181 = vld [vmem:[%s1] sm:$0x1]
      %183 = vset.pattern.permute.xlu0 0
      %184 = vperm.xlu0 %183, %v180
      %v185 = vpop.permute.xlu0 %184
      %v188 = vlaneseq
      %v189 = vshrl.u32 %v188, 7
      %v190 = vsub.s32 0, %v189
      %v191 = vrot.slane %v181, %v190
      %v193 = vmul.f32 %v185, %v191
      %v194 = vld [vmem:[%s175] sm:$0x1]
      %v196 = vlaneseq
      %v197 = vshrl.u32 %v196, 7
      %v198 = vsub.s32 0, %v197
      %v199 = vrot.slane %v194, %v198
      %v201 = vadd.f32 %v193, %v199
      %vm202 = vcmask 261120
      %203 = vst.msk [vmem:[%s179] sm:$0xff] %vm202, %v201
      %p204 = scmp.lt.s32.totalorder %s14, 1
      %s205 = scalar_select %p204, %s14, 1
      %s206 = smul.addr %s205, 8
      %s207 = scalar_lea.vmem %s3, %s206
      // Predicated region
      $region33: #{transformer_autoencoder_forward.28} parent=31 // pred_check
        %p208 = pneg %p105
      $region34: #{transformer_autoencoder_forward.28} parent=31 // pred_check_branch
        %210 = sbr.rel (%p208) target = $region36
      $region35: #{transformer_autoencoder_forward.28} parent=31 // pred_region
        _
      $region36: #{transformer_autoencoder_forward.28} parent=31 // pred_fallthru
        _
    $region32: #{transformer_autoencoder_forward.28} parent=5 // pred_fallthru
      _
    %p211 = scmp.le.s32.totalorder 2, %s9
    // Predicated region
    $region37: #{transformer_autoencoder_forward.28} parent=5 // pred_check
      %p212 = pneg %p211
    $region38: #{transformer_autoencoder_forward.28} parent=5 // pred_check_branch
      %214 = sbr.rel (%p212) target = $region40
    $region39: #{transformer_autoencoder_forward.28} parent=5 // pred_region
      %s215 = ssub.s32 %s9, 2
      // Predicated region
      $region41: #{transformer_autoencoder_forward.28} parent=39 // pred_check
        %p216 = pneg %p111
      $region42: #{transformer_autoencoder_forward.28} parent=39 // pred_check_branch
        %218 = sbr.rel (%p216) target = $region44
      $region43: #{transformer_autoencoder_forward.28} parent=39 // pred_region
        %p219 = scmp.lt.s32.totalorder %s15, 1
        %s220 = scalar_select %p219, %s15, 1
        %s221 = smul.addr %s220, 8
        %s222 = scalar_lea.vmem %s3, %s221
      $region44: #{transformer_autoencoder_forward.28} parent=39 // pred_fallthru
        _
    $region40: #{transformer_autoencoder_forward.28} parent=5 // pred_fallthru
      _
  $region6: #{transformer_autoencoder_forward.28} parent=0 // loop_footer
    %s13 = sadd.s32 1, %s9
  $region7: #{transformer_autoencoder_forward.28} parent=0 // loop_footer_branch
    %8 = sbr.rel target = $region3
  $region8: #{transformer_autoencoder_forward.28} parent=0 // loop_exit
    _

// kernel: transformer_autoencoder_forward.30
$region0: #{transformer_autoencoder_forward.30}
  #allocation0 [shape = 'u32[]', space=smem, size = 0x4, offset = 0x4, fixed_abs, tag = 'smem constant byte address 0x4 - core index']
  #allocation1 [shape = 'u32[144,128]{1,0:T(1,128)}', space=vmem, size = 0x12000, scoped, tag = 'internal scratch']
  %s0 = inlined_call_operand.vmem [shape: f32[8,8,8], index: 0, kind: input, shape index: {}]
  %s1 = inlined_call_operand.vmem [shape: f32[8,8,8], index: 1, kind: input, shape index: {}]
  %s2 = inlined_call_operand.vmem [shape: f32[8,8,8], index: 2, kind: input, shape index: {}]
  %s3 = inlined_call_operand.vmem [shape: f32[8,8,8], index: 3, kind: output, shape index: {}]
  %s4 = sld [smem:[#allocation0]]
  $region45: #{transformer_autoencoder_forward.30} parent=0
    _
  %s6 = ssub.s32 1, %s4
  %s7 = scalar_select 0, %s6, %s4
  loop: start=0, step=1, limit=10
  $region2: #{transformer_autoencoder_forward.30} parent=0 // loop_pre_header
    _
  $region3: #{transformer_autoencoder_forward.30} parent=0 // loop_header
    %s9 = sphi 0, %s13
    %p10 = scmp.ge.s32.totalorder %s9, 10
    %s19 = sphi 0, %s21
    %s22 = sphi 0, %s19
    %s23 = sphi 0, %s22
    %s39 = sphi 0, %s23
    %s45 = sphi 0, %s47
    %s48 = sphi 0, %s45
    %s49 = sphi 0, %s48
    %s65 = sphi 0, %s49
    %s71 = sphi 0, %s73
    %s74 = sphi 0, %s71
    %s75 = sphi 0, %s74
    %s91 = sphi 0, %s75
    %s97 = sphi 0, %s99
    %s100 = sphi 0, %s97
    %s101 = sphi 0, %s100
    %s117 = sphi 0, %s101
  $region4: #{transformer_autoencoder_forward.30} parent=0 // loop_header_branch
    %12 = sbr.rel (%p10) target = $region8
  $region5: #{transformer_autoencoder_forward.30} parent=0 // loop_body
    %s14 = ssub.s32 %s9, 1
    %s15 = ssub.s32 %s9, 2
    %s16 = sadd.s32 %s9, 1
    %s17 = ssub.s32 %s9, %s16
    %p18 = scmp.eq.s32.totalorder %s17, 0
    %s20 = sadd.s32 %s19, 1
    %s21 = scalar_select %p18, %s19, %s20
    %p24 = pneg %p18
    %p25 = scmp.eq.s32.totalorder %s9, 7
    %p26 = por %p24, %p25
    %p27 = scmp.ne.s32.totalorder %s19, %s22
    %p28 = scmp.eq.s32.totalorder %s9, 0
    %p29 = por %p27, %p28
    %p30 = scmp.ne.s32.totalorder %s19, %s22
    %p31 = scmp.eq.s32.totalorder %s14, 7
    %p32 = por %p30, %p31
    %p33 = scmp.ne.s32.totalorder %s22, %s23
    %p34 = scmp.eq.s32.totalorder %s14, 0
    %p35 = por %p33, %p34
    %p36 = scmp.ne.s32.totalorder %s22, %s23
    %p37 = scmp.eq.s32.totalorder %s15, 7
    %p38 = por %p36, %p37
    %p40 = scmp.ne.s32.totalorder %s23, %s39
    %p41 = scmp.eq.s32.totalorder %s15, 0
    %p42 = por %p40, %p41
    %s43 = ssub.s32 %s9, %s16
    %p44 = scmp.eq.s32.totalorder %s43, 0
    %s46 = sadd.s32 %s45, 1
    %s47 = scalar_select %p44, %s45, %s46
    %p50 = pneg %p44
    %p51 = scmp.eq.s32.totalorder %s9, 7
    %p52 = por %p50, %p51
    %p53 = scmp.ne.s32.totalorder %s45, %s48
    %p54 = scmp.eq.s32.totalorder %s9, 0
    %p55 = por %p53, %p54
    %p56 = scmp.ne.s32.totalorder %s45, %s48
    %p57 = scmp.eq.s32.totalorder %s14, 7
    %p58 = por %p56, %p57
    %p59 = scmp.ne.s32.totalorder %s48, %s49
    %p60 = scmp.eq.s32.totalorder %s14, 0
    %p61 = por %p59, %p60
    %p62 = scmp.ne.s32.totalorder %s48, %s49
    %p63 = scmp.eq.s32.totalorder %s15, 7
    %p64 = por %p62, %p63
    %p66 = scmp.ne.s32.totalorder %s49, %s65
    %p67 = scmp.eq.s32.totalorder %s15, 0
    %p68 = por %p66, %p67
    %s69 = ssub.s32 %s9, %s16
    %p70 = scmp.eq.s32.totalorder %s69, 0
    %s72 = sadd.s32 %s71, 1
    %s73 = scalar_select %p70, %s71, %s72
    %p76 = pneg %p70
    %p77 = scmp.eq.s32.totalorder %s9, 7
    %p78 = por %p76, %p77
    %p79 = scmp.ne.s32.totalorder %s71, %s74
    %p80 = scmp.eq.s32.totalorder %s9, 0
    %p81 = por %p79, %p80
    %p82 = scmp.ne.s32.totalorder %s71, %s74
    %p83 = scmp.eq.s32.totalorder %s14, 7
    %p84 = por %p82, %p83
    %p85 = scmp.ne.s32.totalorder %s74, %s75
    %p86 = scmp.eq.s32.totalorder %s14, 0
    %p87 = por %p85, %p86
    %p88 = scmp.ne.s32.totalorder %s74, %s75
    %p89 = scmp.eq.s32.totalorder %s15, 7
    %p90 = por %p88, %p89
    %p92 = scmp.ne.s32.totalorder %s75, %s91
    %p93 = scmp.eq.s32.totalorder %s15, 0
    %p94 = por %p92, %p93
    %s95 = ssub.s32 %s9, %s16
    %p96 = scmp.eq.s32.totalorder %s95, 0
    %s98 = sadd.s32 %s97, 1
    %s99 = scalar_select %p96, %s97, %s98
    %p102 = pneg %p96
    %p103 = scmp.eq.s32.totalorder %s9, 7
    %p104 = por %p102, %p103
    %p105 = scmp.ne.s32.totalorder %s97, %s100
    %p106 = scmp.eq.s32.totalorder %s9, 0
    %p107 = por %p105, %p106
    %p108 = scmp.ne.s32.totalorder %s97, %s100
    %p109 = scmp.eq.s32.totalorder %s14, 7
    %p110 = por %p108, %p109
    %p111 = scmp.ne.s32.totalorder %s100, %s101
    %p112 = scmp.eq.s32.totalorder %s14, 0
    %p113 = por %p111, %p112
    %p114 = scmp.ne.s32.totalorder %s100, %s101
    %p115 = scmp.eq.s32.totalorder %s15, 7
    %p116 = por %p114, %p115
    %p118 = scmp.ne.s32.totalorder %s101, %s117
    %p119 = scmp.eq.s32.totalorder %s15, 0
    %p120 = por %p118, %p119
    %p121 = scmp.le.s32.totalorder 1, %s9
    %p122 = scmp.lt.s32.totalorder %s9, 9
    %p123 = pnand %p121, %p122
    %p124 = pneg %p123
    // Predicated region
    $region9: #{transformer_autoencoder_forward.30} parent=5 // pred_check
      _
    $region10: #{transformer_autoencoder_forward.30} parent=5 // pred_check_branch
      %126 = sbr.rel (%p123) target = $region12
    $region11: #{transformer_autoencoder_forward.30} parent=5 // pred_region
      %s127 = ssub.s32 %s9, 1
    $region12: #{transformer_autoencoder_forward.30} parent=5 // pred_fallthru
      _
    %p128 = scmp.lt.s32.totalorder %s9, 8
    // Predicated region
    $region13: #{transformer_autoencoder_forward.30} parent=5 // pred_check
      %p129 = pneg %p128
    $region14: #{transformer_autoencoder_forward.30} parent=5 // pred_check_branch
      %131 = sbr.rel (%p129) target = $region16
    $region15: #{transformer_autoencoder_forward.30} parent=5 // pred_region
      // Predicated region
      $region17: #{transformer_autoencoder_forward.30} parent=15 // pred_check
        %p132 = pneg %p29
      $region18: #{transformer_autoencoder_forward.30} parent=15 // pred_check_branch
        %134 = sbr.rel (%p132) target = $region20
      $region19: #{transformer_autoencoder_forward.30} parent=15 // pred_region
        %p135 = scmp.lt.s32.totalorder %s9, 7
        %s136 = scalar_select %p135, %s9, 7
        %s137 = smul.addr %s136, 8
        %s138 = scalar_lea.vmem %s0, %s137
      $region20: #{transformer_autoencoder_forward.30} parent=15 // pred_fallthru
        _
      // Predicated region
      $region21: #{transformer_autoencoder_forward.30} parent=15 // pred_check
        %p139 = pneg %p55
      $region22: #{transformer_autoencoder_forward.30} parent=15 // pred_check_branch
        %141 = sbr.rel (%p139) target = $region24
      $region23: #{transformer_autoencoder_forward.30} parent=15 // pred_region
        %p142 = scmp.lt.s32.totalorder %s9, 7
        %s143 = scalar_select %p142, %s9, 7
        %s144 = smul.addr %s143, 8
        %s145 = scalar_lea.vmem %s1, %s144
      $region24: #{transformer_autoencoder_forward.30} parent=15 // pred_fallthru
        _
      // Predicated region
      $region25: #{transformer_autoencoder_forward.30} parent=15 // pred_check
        %p146 = pneg %p81
      $region26: #{transformer_autoencoder_forward.30} parent=15 // pred_check_branch
        %148 = sbr.rel (%p146) target = $region28
      $region27: #{transformer_autoencoder_forward.30} parent=15 // pred_region
        %p149 = scmp.lt.s32.totalorder %s9, 7
        %s150 = scalar_select %p149, %s9, 7
        %s151 = smul.addr %s150, 8
        %s152 = scalar_lea.vmem %s2, %s151
      $region28: #{transformer_autoencoder_forward.30} parent=15 // pred_fallthru
        _
    $region16: #{transformer_autoencoder_forward.30} parent=5 // pred_fallthru
      _
    %p153 = scmp.le.s32.totalorder 1, %s9
    %p154 = scmp.lt.s32.totalorder %s9, 9
    %p155 = pnand %p153, %p154
    %p156 = pneg %p155
    // Predicated region
    $region29: #{transformer_autoencoder_forward.30} parent=5 // pred_check
      _
    $region30: #{transformer_autoencoder_forward.30} parent=5 // pred_check_branch
      %158 = sbr.rel (%p155) target = $region32
    $region31: #{transformer_autoencoder_forward.30} parent=5 // pred_region
      %s159 = ssub.s32 %s9, 1
      %p160 = scmp.lt.s32.totalorder %s14, 7
      %s161 = scalar_select %p160, %s14, 7
      %s162 = smul.addr %s161, 8
      %s163 = scalar_lea.vmem %s0, %s162
      %p164 = pneg %p35
      %p165 = pneg %p32
      %p166 = scmp.lt.s32.totalorder %s14, 7
      %s167 = scalar_select %p166, %s14, 7
      %s168 = smul.addr %s167, 8
      %s169 = scalar_lea.vmem %s1, %s168
      %p170 = pneg %p61
      %p171 = pneg %p58
      %p172 = scmp.lt.s32.totalorder %s14, 7
      %s173 = scalar_select %p172, %s14, 7
      %s174 = smul.addr %s173, 8
      %s175 = scalar_lea.vmem %s2, %s174
      %p176 = pneg %p87
      %p177 = pneg %p84
      %p178 = pneg %p113
      %p179 = pneg %p110
      %p180 = scmp.lt.s32.totalorder %s14, 7
      %s181 = scalar_select %p180, %s14, 7
      %s182 = smul.addr %s181, 8
      %s183 = scalar_lea.vmem %s3, %s182
      %p184 = scmp.lt.s32.totalorder %s14, 7
      %s185 = scalar_select %p184, %s14, 7
      %s186 = smul.addr %s185, 8
      %s187 = scalar_lea.vmem %s0, %s186
      %p188 = scmp.lt.s32.totalorder %s14, 7
      %s189 = scalar_select %p188, %s14, 7
      %s190 = smul.addr %s189, 8
      %s191 = scalar_lea.vmem %s1, %s190
      %p192 = scmp.lt.s32.totalorder %s14, 7
      %s193 = scalar_select %p192, %s14, 7
      %s194 = smul.addr %s193, 8
      %s195 = scalar_lea.vmem %s2, %s194
      %p196 = scmp.lt.s32.totalorder %s14, 7
      %s197 = scalar_select %p196, %s14, 7
      %s198 = smul.addr %s197, 8
      %s199 = scalar_lea.vmem %s3, %s198
      %v200 = vld [vmem:[%s187] sm:$0xff]
      %v201 = vld [vmem:[%s191] sm:$0xff]
      %v202 = vld [vmem:[%s195] sm:$0xff]
      %vm203 = vcmask 64512
      %v205 = vsel %vm203, %v200, 0
      %v208 = vsel %vm203, %v201, 0
      %210 = vmatprep.subr.mxu0 0.0
      %211 = vmatpush1.xpose.msra.mxu0 0.0
      %212 = vmatprep.subr.mxu0 0.0
      %213 = vmatpush1.xpose.msra.mxu0 0.0
      %214 = vmatprep.subr.mxu0 0.0
      %215 = vmatpush1.xpose.msra.mxu0 0.0
      %216 = vmatprep.subr.mxu0 0.0
      %217 = vmatpush1.xpose.msra.mxu0 0.0
      %218 = vmatprep.subr.mxu0 0.0
      %219 = vmatpush1.xpose.msra.mxu0 0.0
      %220 = vmatprep.subr.mxu0 0.0
      %221 = vmatpush1.xpose.msra.mxu0 0.0
      %222 = vmatprep.subr.mxu0 0.0
      %223 = vmatpush1.xpose.msra.mxu0 0.0
      %224 = vmatprep.subr.mxu0 0.0
      %225 = vmatpush1.xpose.msra.mxu0 0.0
      %226 = vmatprep.subr.mxu0 0.0
      %227 = vmatpush1.xpose.msra.mxu0 0.0
      %228 = vmatprep.subr.mxu0 0.0
      %229 = vmatpush1.xpose.msra.mxu0 0.0
      %230 = vmatprep.subr.mxu0 0.0
      %231 = vmatpush1.xpose.msra.mxu0 0.0
      %232 = vmatprep.subr.mxu0 0.0
      %233 = vmatpush1.xpose.msra.mxu0 0.0
      %234 = vmatprep.subr.mxu0 0.0
      %235 = vmatpush1.xpose.msra.mxu0 0.0
      %236 = vmatprep.subr.mxu0 0.0
      %237 = vmatpush1.xpose.msra.mxu0 0.0
      %238 = vmatprep.subr.mxu0 0.0
      %239 = vmatpush1.xpose.msra.mxu0 0.0
      %240 = vmatprep.subr.mxu0 0.0
      %241 = vmatpush1.xpose.msra.mxu0 %v208
      %242 = vmatprep.subr.mxu0 0.0
      %243 = vmatpush2.xpose.msra.mxu0 0.0
      %244 = vmatprep.subr.mxu0 0.0
      %245 = vmatpush2.xpose.msra.mxu0 0.0
      %246 = vmatprep.subr.mxu0 0.0
      %247 = vmatpush2.xpose.msra.mxu0 0.0
      %248 = vmatprep.subr.mxu0 0.0
      %249 = vmatpush2.xpose.msra.mxu0 0.0
      %250 = vmatprep.subr.mxu0 0.0
      %251 = vmatpush2.xpose.msra.mxu0 0.0
      %252 = vmatprep.subr.mxu0 0.0
      %253 = vmatpush2.xpose.msra.mxu0 0.0
      %254 = vmatprep.subr.mxu0 0.0
      %255 = vmatpush2.xpose.msra.mxu0 0.0
      %256 = vmatprep.subr.mxu0 0.0
      %257 = vmatpush2.xpose.msra.mxu0 0.0
      %258 = vmatprep.subr.mxu0 0.0
      %259 = vmatpush2.xpose.msra.mxu0 0.0
      %260 = vmatprep.subr.mxu0 0.0
      %261 = vmatpush2.xpose.msra.mxu0 0.0
      %262 = vmatprep.subr.mxu0 0.0
      %263 = vmatpush2.xpose.msra.mxu0 0.0
      %264 = vmatprep.subr.mxu0 0.0
      %265 = vmatpush2.xpose.msra.mxu0 0.0
      %266 = vmatprep.subr.mxu0 0.0
      %267 = vmatpush2.xpose.msra.mxu0 0.0
      %268 = vmatprep.subr.mxu0 0.0
      %269 = vmatpush2.xpose.msra.mxu0 0.0
      %270 = vmatprep.subr.mxu0 0.0
      %271 = vmatpush2.xpose.msra.mxu0 0.0
      %272 = vmatprep.subr.mxu0 0.0
      %273 = vmatpush2.xpose.msra.mxu0 0.0
      %274 = vmatprep.mubr.f32.mxu0 0.0
      %275 = vmatmul.mubr.f32.gmra.mxu0 %v205
      %v276 = vpop.f32.mrf.mxu0
      %v277 = vadd.f32 0.0, %v276
      %v278 = vpop.f32.mrf.mxu0
      %279 = vdwg.mxu0
      %v280 = vmul.f32 %v277, 0.35355338
      %v281 = vsel %vm203, %v280, -inf
      %282 = vmax.xlane.f32.xlu0 %v281
      %v283 = vpop.xlane.xlu0 %282
      %v284 = vsub.f32 %v280, %v283
      %v285 = vmul.f32 %v284, 1.442695
      %v286 = vpow.pop %v285
      %v287 = vsel %vm203, %v286, 0.0
      %288 = vadd.xlane.f32.xlu0 %v287
      %v289 = vpop.xlane.xlu0 %288
      %v290 = vrcp.pop %v289
      %v291 = vmul.f32 %v286, %v290
      %v293 = vsel %vm203, %v291, 0
      %295 = vmatprep.subr.mxu0 0.0
      %296 = vmatpush1.msra.mxu0 0.0
      %297 = vmatprep.subr.mxu0 0.0
      %298 = vmatpush1.msra.mxu0 0.0
      %299 = vmatprep.subr.mxu0 0.0
      %300 = vmatpush1.msra.mxu0 0.0
      %301 = vmatprep.subr.mxu0 0.0
      %302 = vmatpush1.msra.mxu0 0.0
      %303 = vmatprep.subr.mxu0 0.0
      %304 = vmatpush1.msra.mxu0 0.0
      %305 = vmatprep.subr.mxu0 0.0
      %306 = vmatpush1.msra.mxu0 0.0
      %307 = vmatprep.subr.mxu0 0.0
      %308 = vmatpush1.msra.mxu0 0.0
      %309 = vmatprep.subr.mxu0 0.0
      %310 = vmatpush1.msra.mxu0 0.0
      %311 = vmatprep.subr.mxu0 0.0
      %312 = vmatpush1.msra.mxu0 0.0
      %313 = vmatprep.subr.mxu0 0.0
      %314 = vmatpush1.msra.mxu0 0.0
      %315 = vmatprep.subr.mxu0 0.0
      %316 = vmatpush1.msra.mxu0 0.0
      %317 = vmatprep.subr.mxu0 0.0
      %318 = vmatpush1.msra.mxu0 0.0
      %319 = vmatprep.subr.mxu0 0.0
      %320 = vmatpush1.msra.mxu0 0.0
      %321 = vmatprep.subr.mxu0 0.0
      %322 = vmatpush1.msra.mxu0 0.0
      %323 = vmatprep.subr.mxu0 0.0
      %324 = vmatpush1.msra.mxu0 0.0
      %325 = vmatprep.subr.mxu0 0.0
      %326 = vmatpush1.msra.mxu0 %v202
      %327 = vmatprep.subr.mxu0 0.0
      %328 = vmatpush2.msra.mxu0 0.0
      %329 = vmatprep.subr.mxu0 0.0
      %330 = vmatpush2.msra.mxu0 0.0
      %331 = vmatprep.subr.mxu0 0.0
      %332 = vmatpush2.msra.mxu0 0.0
      %333 = vmatprep.subr.mxu0 0.0
      %334 = vmatpush2.msra.mxu0 0.0
      %335 = vmatprep.subr.mxu0 0.0
      %336 = vmatpush2.msra.mxu0 0.0
      %337 = vmatprep.subr.mxu0 0.0
      %338 = vmatpush2.msra.mxu0 0.0
      %339 = vmatprep.subr.mxu0 0.0
      %340 = vmatpush2.msra.mxu0 0.0
      %341 = vmatprep.subr.mxu0 0.0
      %342 = vmatpush2.msra.mxu0 0.0
      %343 = vmatprep.subr.mxu0 0.0
      %344 = vmatpush2.msra.mxu0 0.0
      %345 = vmatprep.subr.mxu0 0.0
      %346 = vmatpush2.msra.mxu0 0.0
      %347 = vmatprep.subr.mxu0 0.0
      %348 = vmatpush2.msra.mxu0 0.0
      %349 = vmatprep.subr.mxu0 0.0
      %350 = vmatpush2.msra.mxu0 0.0
      %351 = vmatprep.subr.mxu0 0.0
      %352 = vmatpush2.msra.mxu0 0.0
      %353 = vmatprep.subr.mxu0 0.0
      %354 = vmatpush2.msra.mxu0 0.0
      %355 = vmatprep.subr.mxu0 0.0
      %356 = vmatpush2.msra.mxu0 0.0
      %357 = vmatprep.subr.mxu0 0.0
      %358 = vmatpush2.msra.mxu0 0.0
      %359 = vmatprep.mubr.f32.mxu0 0.0
      %360 = vmatmul.mubr.f32.gmra.mxu0 %v293
      %v361 = vpop.f32.mrf.mxu0
      %v362 = vadd.f32 0.0, %v361
      %v363 = vpop.f32.mrf.mxu0
      %364 = vdwg.mxu0
      %365 = vst.msk [vmem:[%s199] sm:$0xff] %vm203, %v362
      %p366 = scmp.lt.s32.totalorder %s14, 7
      %s367 = scalar_select %p366, %s14, 7
      %s368 = smul.addr %s367, 8
      %s369 = scalar_lea.vmem %s3, %s368
      // Predicated region
      $region33: #{transformer_autoencoder_forward.30} parent=31 // pred_check
        %p370 = pneg %p110
      $region34: #{transformer_autoencoder_forward.30} parent=31 // pred_check_branch
        %372 = sbr.rel (%p370) target = $region36
      $region35: #{transformer_autoencoder_forward.30} parent=31 // pred_region
        _
      $region36: #{transformer_autoencoder_forward.30} parent=31 // pred_fallthru
        _
    $region32: #{transformer_autoencoder_forward.30} parent=5 // pred_fallthru
      _
    %p373 = scmp.le.s32.totalorder 2, %s9
    // Predicated region
    $region37: #{transformer_autoencoder_forward.30} parent=5 // pred_check
      %p374 = pneg %p373
    $region38: #{transformer_autoencoder_forward.30} parent=5 // pred_check_branch
      %376 = sbr.rel (%p374) target = $region40
    $region39: #{transformer_autoencoder_forward.30} parent=5 // pred_region
      %s377 = ssub.s32 %s9, 2
      // Predicated region
      $region41: #{transformer_autoencoder_forward.30} parent=39 // pred_check
        %p378 = pneg %p116
      $region42: #{transformer_autoencoder_forward.30} parent=39 // pred_check_branch
        %380 = sbr.rel (%p378) target = $region44
      $region43: #{transformer_autoencoder_forward.30} parent=39 // pred_region
        %p381 = scmp.lt.s32.totalorder %s15, 7
        %s382 = scalar_select %p381, %s15, 7
        %s383 = smul.addr %s382, 8
        %s384 = scalar_lea.vmem %s3, %s383
      $region44: #{transformer_autoencoder_forward.30} parent=39 // pred_fallthru
        _
    $region40: #{transformer_autoencoder_forward.30} parent=5 // pred_fallthru
      _
  $region6: #{transformer_autoencoder_forward.30} parent=0 // loop_footer
    %s13 = sadd.s32 1, %s9
  $region7: #{transformer_autoencoder_forward.30} parent=0 // loop_footer_branch
    %8 = sbr.rel target = $region3
  $region8: #{transformer_autoencoder_forward.30} parent=0 // loop_exit
    _

// kernel: transformer_autoencoder_forward.31
$region0: #{transformer_autoencoder_forward.31}
  #allocation0 [shape = 'u32[]', space=smem, size = 0x4, offset = 0x4, fixed_abs, tag = 'smem constant byte address 0x4 - core index']
  #allocation1 [shape = 'u32[144,128]{1,0:T(1,128)}', space=vmem, size = 0x12000, scoped, tag = 'internal scratch']
  %s0 = inlined_call_operand.vmem [shape: f32[16,32], index: 0, kind: input, shape index: {}]
  %s1 = inlined_call_operand.vmem [shape: f32[32,32], index: 1, kind: input, shape index: {}]
  %s2 = inlined_call_operand.vmem [shape: f32[1,32], index: 2, kind: input, shape index: {}]
  %s3 = inlined_call_operand.vmem [shape: f32[16,32], index: 3, kind: input, shape index: {}]
  %s4 = inlined_call_operand.vmem [shape: f32[1,32], index: 4, kind: input, shape index: {}]
  %s5 = inlined_call_operand.vmem [shape: f32[1,32], index: 5, kind: input, shape index: {}]
  %s6 = inlined_call_operand.vmem [shape: f32[16,32], index: 6, kind: output, shape index: {}]
  %s7 = sld [smem:[#allocation0]]
  $region34: #{transformer_autoencoder_forward.31} parent=0
    _
  %s9 = ssub.s32 1, %s7
  %s10 = scalar_select 0, %s9, %s7
  // Predicated region
  $region2: #{transformer_autoencoder_forward.31} parent=0 // pred_check
    _
  $region3: #{transformer_autoencoder_forward.31} parent=0 // pred_check_branch
    %12 = sbr.rel (0) target = $region5
  $region4: #{transformer_autoencoder_forward.31} parent=0 // pred_region
    _
  $region5: #{transformer_autoencoder_forward.31} parent=0 // pred_fallthru
    _
  // Predicated region
  $region6: #{transformer_autoencoder_forward.31} parent=0 // pred_check
    _
  $region7: #{transformer_autoencoder_forward.31} parent=0 // pred_check_branch
    %14 = sbr.rel (0) target = $region9
  $region8: #{transformer_autoencoder_forward.31} parent=0 // pred_region
    _
  $region9: #{transformer_autoencoder_forward.31} parent=0 // pred_fallthru
    _
  // Predicated region
  $region10: #{transformer_autoencoder_forward.31} parent=0 // pred_check
    _
  $region11: #{transformer_autoencoder_forward.31} parent=0 // pred_check_branch
    %16 = sbr.rel (0) target = $region13
  $region12: #{transformer_autoencoder_forward.31} parent=0 // pred_region
    _
  $region13: #{transformer_autoencoder_forward.31} parent=0 // pred_fallthru
    _
  // Predicated region
  $region14: #{transformer_autoencoder_forward.31} parent=0 // pred_check
    _
  $region15: #{transformer_autoencoder_forward.31} parent=0 // pred_check_branch
    %18 = sbr.rel (0) target = $region17
  $region16: #{transformer_autoencoder_forward.31} parent=0 // pred_region
    _
  $region17: #{transformer_autoencoder_forward.31} parent=0 // pred_fallthru
    _
  // Predicated region
  $region18: #{transformer_autoencoder_forward.31} parent=0 // pred_check
    _
  $region19: #{transformer_autoencoder_forward.31} parent=0 // pred_check_branch
    %20 = sbr.rel (0) target = $region21
  $region20: #{transformer_autoencoder_forward.31} parent=0 // pred_region
    _
  $region21: #{transformer_autoencoder_forward.31} parent=0 // pred_fallthru
    _
  // Predicated region
  $region22: #{transformer_autoencoder_forward.31} parent=0 // pred_check
    _
  $region23: #{transformer_autoencoder_forward.31} parent=0 // pred_check_branch
    %22 = sbr.rel (0) target = $region25
  $region24: #{transformer_autoencoder_forward.31} parent=0 // pred_region
    _
  $region25: #{transformer_autoencoder_forward.31} parent=0 // pred_fallthru
    _
  %v23 = vld [vmem:[%s0] sm:$0xff]
  %v24 = vld [vmem:[%s0 + $0x8] sm:$0xff]
  %v25 = vld [vmem:[%s1] sm:$0xff]
  %v26 = vld [vmem:[%s1 + $0x8] sm:$0xff]
  %v27 = vld [vmem:[%s1 + $0x10] sm:$0xff]
  %v28 = vld [vmem:[%s1 + $0x18] sm:$0xff]
  %v29 = vld [vmem:[%s2] sm:$0x1]
  %v31 = vlaneseq
  %v32 = vshrl.u32 %v31, 7
  %v33 = vsub.s32 0, %v32
  %v34 = vrot.slane %v29, %v33
  %vm36 = vcmask 261120
  %v38 = vsel %vm36, %v23, 0
  %v41 = vsel %vm36, %v24, 0
  %43 = vmatprep.subr.mxu0 0.0
  %44 = vmatpush1.msra.mxu0 0.0
  %45 = vmatprep.subr.mxu0 0.0
  %46 = vmatpush1.msra.mxu0 0.0
  %47 = vmatprep.subr.mxu0 0.0
  %48 = vmatpush1.msra.mxu0 0.0
  %49 = vmatprep.subr.mxu0 0.0
  %50 = vmatpush1.msra.mxu0 0.0
  %51 = vmatprep.subr.mxu0 0.0
  %52 = vmatpush1.msra.mxu0 0.0
  %53 = vmatprep.subr.mxu0 0.0
  %54 = vmatpush1.msra.mxu0 0.0
  %55 = vmatprep.subr.mxu0 0.0
  %56 = vmatpush1.msra.mxu0 0.0
  %57 = vmatprep.subr.mxu0 0.0
  %58 = vmatpush1.msra.mxu0 0.0
  %59 = vmatprep.subr.mxu0 0.0
  %60 = vmatpush1.msra.mxu0 0.0
  %61 = vmatprep.subr.mxu0 0.0
  %62 = vmatpush1.msra.mxu0 0.0
  %63 = vmatprep.subr.mxu0 0.0
  %64 = vmatpush1.msra.mxu0 0.0
  %65 = vmatprep.subr.mxu0 0.0
  %66 = vmatpush1.msra.mxu0 0.0
  %67 = vmatprep.subr.mxu0 0.0
  %68 = vmatpush1.msra.mxu0 %v28
  %69 = vmatprep.subr.mxu0 0.0
  %70 = vmatpush1.msra.mxu0 %v27
  %71 = vmatprep.subr.mxu0 0.0
  %72 = vmatpush1.msra.mxu0 %v26
  %73 = vmatprep.subr.mxu0 0.0
  %74 = vmatpush1.msra.mxu0 %v25
  %75 = vmatprep.subr.mxu0 0.0
  %76 = vmatpush2.msra.mxu0 0.0
  %77 = vmatprep.subr.mxu0 0.0
  %78 = vmatpush2.msra.mxu0 0.0
  %79 = vmatprep.subr.mxu0 0.0
  %80 = vmatpush2.msra.mxu0 0.0
  %81 = vmatprep.subr.mxu0 0.0
  %82 = vmatpush2.msra.mxu0 0.0
  %83 = vmatprep.subr.mxu0 0.0
  %84 = vmatpush2.msra.mxu0 0.0
  %85 = vmatprep.subr.mxu0 0.0
  %86 = vmatpush2.msra.mxu0 0.0
  %87 = vmatprep.subr.mxu0 0.0
  %88 = vmatpush2.msra.mxu0 0.0
  %89 = vmatprep.subr.mxu0 0.0
  %90 = vmatpush2.msra.mxu0 0.0
  %91 = vmatprep.subr.mxu0 0.0
  %92 = vmatpush2.msra.mxu0 0.0
  %93 = vmatprep.subr.mxu0 0.0
  %94 = vmatpush2.msra.mxu0 0.0
  %95 = vmatprep.subr.mxu0 0.0
  %96 = vmatpush2.msra.mxu0 0.0
  %97 = vmatprep.subr.mxu0 0.0
  %98 = vmatpush2.msra.mxu0 0.0
  %99 = vmatprep.subr.mxu0 0.0
  %100 = vmatpush2.msra.mxu0 0.0
  %101 = vmatprep.subr.mxu0 0.0
  %102 = vmatpush2.msra.mxu0 0.0
  %103 = vmatprep.subr.mxu0 0.0
  %104 = vmatpush2.msra.mxu0 0.0
  %105 = vmatprep.subr.mxu0 0.0
  %106 = vmatpush2.msra.mxu0 0.0
  %107 = vmatprep.mubr.f32.mxu0 0.0
  %108 = vmatmul.mubr.f32.gmra.mxu0 %v38
  %v109 = vpop.f32.mrf.mxu0
  %v110 = vadd.f32 %v34, %v109
  %v111 = vpop.f32.mrf.mxu0
  %112 = vmatprep.mubr.f32.mxu0 0.0
  %113 = vmatmul.mubr.f32.gmra.mxu0 %v41
  %v114 = vpop.f32.mrf.mxu0
  %v115 = vadd.f32 %v34, %v114
  %v116 = vpop.f32.mrf.mxu0
  %117 = vdwg.mxu0
  %v118 = vld [vmem:[%s3] sm:$0xff]
  %v119 = vld [vmem:[%s3 + $0x8] sm:$0xff]
  %v120 = vadd.f32 %v110, %v118
  %v121 = vadd.f32 %v115, %v119
  %v122 = vsel %vm36, %v120, 0.0
  %123 = vadd.xlane.f32.xlu0 %v122
  %v124 = vpop.xlane.xlu0 %123
  %v125 = vsel %vm36, %v121, 0.0
  %126 = vadd.xlane.f32.xlu0 %v125
  %v127 = vpop.xlane.xlu0 %126
  %v128 = vrcp.pop 32.0
  %v129 = vmul.f32 %v124, %v128
  %v130 = vmul.f32 %v127, %v128
  %v131 = vsub.f32 %v120, %v129
  %v132 = vsub.f32 %v121, %v130
  %v133 = vmul.f32 %v131, %v131
  %v134 = vmul.f32 %v132, %v132
  %v135 = vsel %vm36, %v133, 0.0
  %136 = vadd.xlane.f32.xlu0 %v135
  %v137 = vpop.xlane.xlu0 %136
  %v138 = vsel %vm36, %v134, 0.0
  %139 = vadd.xlane.f32.xlu0 %v138
  %v140 = vpop.xlane.xlu0 %139
  %v141 = vmul.f32 %v137, %v128
  %v142 = vmul.f32 %v140, %v128
  %v143 = vadd.f32 %v141, 1e-05
  %v144 = vadd.f32 %v142, 1e-05
  %v145 = vrsqrt.pop %v143
  %v146 = vrsqrt.pop %v144
  %v147 = vmul.f32 %v131, %v145
  %v148 = vmul.f32 %v132, %v146
  %v149 = vld [vmem:[%s4] sm:$0x1]
  %v151 = vlaneseq
  %v152 = vshrl.u32 %v151, 7
  %v153 = vsub.s32 0, %v152
  %v154 = vrot.slane %v149, %v153
  %v156 = vmul.f32 %v147, %v154
  %v157 = vmul.f32 %v148, %v154
  %v158 = vld [vmem:[%s5] sm:$0x1]
  %v160 = vlaneseq
  %v161 = vshrl.u32 %v160, 7
  %v162 = vsub.s32 0, %v161
  %v163 = vrot.slane %v158, %v162
  %v165 = vadd.f32 %v156, %v163
  %v166 = vadd.f32 %v157, %v163
  %167 = vst.msk [vmem:[%s6] sm:$0xff] %vm36, %v165
  %168 = vst.msk [vmem:[%s6 + $0x8] sm:$0xff] %vm36, %v166
  // Predicated region
  $region26: #{transformer_autoencoder_forward.31} parent=0 // pred_check
    _
  $region27: #{transformer_autoencoder_forward.31} parent=0 // pred_check_branch
    %170 = sbr.rel (0) target = $region29
  $region28: #{transformer_autoencoder_forward.31} parent=0 // pred_region
    _
  $region29: #{transformer_autoencoder_forward.31} parent=0 // pred_fallthru
    _
  // Predicated region
  $region30: #{transformer_autoencoder_forward.31} parent=0 // pred_check
    _
  $region31: #{transformer_autoencoder_forward.31} parent=0 // pred_check_branch
    %172 = sbr.rel (0) target = $region33
  $region32: #{transformer_autoencoder_forward.31} parent=0 // pred_region
    _
  $region33: #{transformer_autoencoder_forward.31} parent=0 // pred_fallthru
    _

// kernel: transformer_autoencoder_forward.37
$region0: #{transformer_autoencoder_forward.37}
  #allocation0 [shape = 'u32[]', space=smem, size = 0x4, offset = 0x4, fixed_abs, tag = 'smem constant byte address 0x4 - core index']
  #allocation1 [shape = 'u32[144,128]{1,0:T(1,128)}', space=vmem, size = 0x12000, scoped, tag = 'internal scratch']
  %s0 = inlined_call_operand.vmem [shape: f32[16,32], index: 0, kind: input, shape index: {}]
  %s1 = inlined_call_operand.vmem [shape: f32[1,32], index: 1, kind: input, shape index: {}]
  %s2 = inlined_call_operand.vmem [shape: f32[1,32], index: 2, kind: input, shape index: {}]
  %s3 = inlined_call_operand.vmem [shape: f32[16,32], index: 3, kind: output, shape index: {}]
  %s4 = sld [smem:[#allocation0]]
  $region22: #{transformer_autoencoder_forward.37} parent=0
    _
  %s6 = ssub.s32 1, %s4
  %s7 = scalar_select 0, %s6, %s4
  // Predicated region
  $region2: #{transformer_autoencoder_forward.37} parent=0 // pred_check
    _
  $region3: #{transformer_autoencoder_forward.37} parent=0 // pred_check_branch
    %9 = sbr.rel (0) target = $region5
  $region4: #{transformer_autoencoder_forward.37} parent=0 // pred_region
    _
  $region5: #{transformer_autoencoder_forward.37} parent=0 // pred_fallthru
    _
  // Predicated region
  $region6: #{transformer_autoencoder_forward.37} parent=0 // pred_check
    _
  $region7: #{transformer_autoencoder_forward.37} parent=0 // pred_check_branch
    %11 = sbr.rel (0) target = $region9
  $region8: #{transformer_autoencoder_forward.37} parent=0 // pred_region
    _
  $region9: #{transformer_autoencoder_forward.37} parent=0 // pred_fallthru
    _
  // Predicated region
  $region10: #{transformer_autoencoder_forward.37} parent=0 // pred_check
    _
  $region11: #{transformer_autoencoder_forward.37} parent=0 // pred_check_branch
    %13 = sbr.rel (0) target = $region13
  $region12: #{transformer_autoencoder_forward.37} parent=0 // pred_region
    _
  $region13: #{transformer_autoencoder_forward.37} parent=0 // pred_fallthru
    _
  %v14 = vld [vmem:[%s0] sm:$0xff]
  %v15 = vld [vmem:[%s0 + $0x8] sm:$0xff]
  %vm16 = vcmask 261120
  %v17 = vsel %vm16, %v14, 0.0
  %18 = vadd.xlane.f32.xlu0 %v17
  %v19 = vpop.xlane.xlu0 %18
  %v20 = vsel %vm16, %v15, 0.0
  %21 = vadd.xlane.f32.xlu0 %v20
  %v22 = vpop.xlane.xlu0 %21
  %v23 = vrcp.pop 32.0
  %v24 = vmul.f32 %v19, %v23
  %v25 = vmul.f32 %v22, %v23
  %v26 = vsub.f32 %v14, %v24
  %v27 = vsub.f32 %v15, %v25
  %v28 = vmul.f32 %v26, %v26
  %v29 = vmul.f32 %v27, %v27
  %v30 = vsel %vm16, %v28, 0.0
  %31 = vadd.xlane.f32.xlu0 %v30
  %v32 = vpop.xlane.xlu0 %31
  %v33 = vsel %vm16, %v29, 0.0
  %34 = vadd.xlane.f32.xlu0 %v33
  %v35 = vpop.xlane.xlu0 %34
  %v36 = vmul.f32 %v32, %v23
  %v37 = vmul.f32 %v35, %v23
  %v38 = vadd.f32 %v36, 1e-05
  %v39 = vadd.f32 %v37, 1e-05
  %v40 = vrsqrt.pop %v38
  %v41 = vrsqrt.pop %v39
  %v42 = vmul.f32 %v26, %v40
  %v43 = vmul.f32 %v27, %v41
  %v44 = vld [vmem:[%s1] sm:$0x1]
  %v46 = vlaneseq
  %v47 = vshrl.u32 %v46, 7
  %v48 = vsub.s32 0, %v47
  %v49 = vrot.slane %v44, %v48
  %v51 = vmul.f32 %v42, %v49
  %v52 = vmul.f32 %v43, %v49
  %v53 = vld [vmem:[%s2] sm:$0x1]
  %v55 = vlaneseq
  %v56 = vshrl.u32 %v55, 7
  %v57 = vsub.s32 0, %v56
  %v58 = vrot.slane %v53, %v57
  %v60 = vadd.f32 %v51, %v58
  %v61 = vadd.f32 %v52, %v58
  %62 = vst.msk [vmem:[%s3] sm:$0xff] %vm16, %v60
  %63 = vst.msk [vmem:[%s3 + $0x8] sm:$0xff] %vm16, %v61
  // Predicated region
  $region14: #{transformer_autoencoder_forward.37} parent=0 // pred_check
    _
  $region15: #{transformer_autoencoder_forward.37} parent=0 // pred_check_branch
    %65 = sbr.rel (0) target = $region17
  $region16: #{transformer_autoencoder_forward.37} parent=0 // pred_region
    _
  $region17: #{transformer_autoencoder_forward.37} parent=0 // pred_fallthru
    _
  // Predicated region
  $region18: #{transformer_autoencoder_forward.37} parent=0 // pred_check
    _
  $region19: #{transformer_autoencoder_forward.37} parent=0 // pred_check_branch
    %67 = sbr.rel (0) target = $region21
  $region20: #{transformer_autoencoder_forward.37} parent=0 // pred_region
    _
  $region21: #{transformer_autoencoder_forward.37} parent=0 // pred_fallthru
    _

// kernel: transformer_autoencoder_forward.32
$region0: #{transformer_autoencoder_forward.32}
  #allocation0 [shape = 'u32[]', space=smem, size = 0x4, offset = 0x4, fixed_abs, tag = 'smem constant byte address 0x4 - core index']
  #allocation1 [shape = 'u32[144,128]{1,0:T(1,128)}', space=vmem, size = 0x12000, scoped, tag = 'internal scratch']
  %s0 = inlined_call_operand.vmem [shape: f32[16,32], index: 0, kind: input, shape index: {}]
  %s1 = inlined_call_operand.vmem [shape: f32[32,64], index: 1, kind: input, shape index: {}]
  %s2 = inlined_call_operand.vmem [shape: f32[1,64], index: 2, kind: input, shape index: {}]
  %s3 = inlined_call_operand.vmem [shape: f32[64,32], index: 3, kind: input, shape index: {}]
  %s4 = inlined_call_operand.vmem [shape: f32[1,32], index: 4, kind: input, shape index: {}]
  %s5 = inlined_call_operand.vmem [shape: f32[1,32], index: 5, kind: input, shape index: {}]
  %s6 = inlined_call_operand.vmem [shape: f32[1,32], index: 6, kind: input, shape index: {}]
  %s7 = inlined_call_operand.vmem [shape: f32[16,32], index: 7, kind: output, shape index: {}]
  %s8 = sld [smem:[#allocation0]]
  $region38: #{transformer_autoencoder_forward.32} parent=0
    _
  %s10 = ssub.s32 1, %s8
  %s11 = scalar_select 0, %s10, %s8
  // Predicated region
  $region2: #{transformer_autoencoder_forward.32} parent=0 // pred_check
    _
  $region3: #{transformer_autoencoder_forward.32} parent=0 // pred_check_branch
    %13 = sbr.rel (0) target = $region5
  $region4: #{transformer_autoencoder_forward.32} parent=0 // pred_region
    _
  $region5: #{transformer_autoencoder_forward.32} parent=0 // pred_fallthru
    _
  // Predicated region
  $region6: #{transformer_autoencoder_forward.32} parent=0 // pred_check
    _
  $region7: #{transformer_autoencoder_forward.32} parent=0 // pred_check_branch
    %15 = sbr.rel (0) target = $region9
  $region8: #{transformer_autoencoder_forward.32} parent=0 // pred_region
    _
  $region9: #{transformer_autoencoder_forward.32} parent=0 // pred_fallthru
    _
  // Predicated region
  $region10: #{transformer_autoencoder_forward.32} parent=0 // pred_check
    _
  $region11: #{transformer_autoencoder_forward.32} parent=0 // pred_check_branch
    %17 = sbr.rel (0) target = $region13
  $region12: #{transformer_autoencoder_forward.32} parent=0 // pred_region
    _
  $region13: #{transformer_autoencoder_forward.32} parent=0 // pred_fallthru
    _
  // Predicated region
  $region14: #{transformer_autoencoder_forward.32} parent=0 // pred_check
    _
  $region15: #{transformer_autoencoder_forward.32} parent=0 // pred_check_branch
    %19 = sbr.rel (0) target = $region17
  $region16: #{transformer_autoencoder_forward.32} parent=0 // pred_region
    _
  $region17: #{transformer_autoencoder_forward.32} parent=0 // pred_fallthru
    _
  // Predicated region
  $region18: #{transformer_autoencoder_forward.32} parent=0 // pred_check
    _
  $region19: #{transformer_autoencoder_forward.32} parent=0 // pred_check_branch
    %21 = sbr.rel (0) target = $region21
  $region20: #{transformer_autoencoder_forward.32} parent=0 // pred_region
    _
  $region21: #{transformer_autoencoder_forward.32} parent=0 // pred_fallthru
    _
  // Predicated region
  $region22: #{transformer_autoencoder_forward.32} parent=0 // pred_check
    _
  $region23: #{transformer_autoencoder_forward.32} parent=0 // pred_check_branch
    %23 = sbr.rel (0) target = $region25
  $region24: #{transformer_autoencoder_forward.32} parent=0 // pred_region
    _
  $region25: #{transformer_autoencoder_forward.32} parent=0 // pred_fallthru
    _
  // Predicated region
  $region26: #{transformer_autoencoder_forward.32} parent=0 // pred_check
    _
  $region27: #{transformer_autoencoder_forward.32} parent=0 // pred_check_branch
    %25 = sbr.rel (0) target = $region29
  $region28: #{transformer_autoencoder_forward.32} parent=0 // pred_region
    _
  $region29: #{transformer_autoencoder_forward.32} parent=0 // pred_fallthru
    _
  %v26 = vld [vmem:[%s0] sm:$0xff]
  %v27 = vld [vmem:[%s0 + $0x8] sm:$0xff]
  %v28 = vld [vmem:[%s1] sm:$0xff]
  %v29 = vld [vmem:[%s1 + $0x8] sm:$0xff]
  %v30 = vld [vmem:[%s1 + $0x10] sm:$0xff]
  %v31 = vld [vmem:[%s1 + $0x18] sm:$0xff]
  %v32 = vld [vmem:[%s2] sm:$0x1]
  %v34 = vlaneseq
  %v35 = vshrl.u32 %v34, 7
  %v36 = vsub.s32 0, %v35
  %v37 = vrot.slane %v32, %v36
  %vm39 = vcmask 261120
  %v41 = vsel %vm39, %v26, 0
  %v44 = vsel %vm39, %v27, 0
  %46 = vmatprep.subr.mxu0 0.0
  %47 = vmatpush1.msra.mxu0 0.0
  %48 = vmatprep.subr.mxu0 0.0
  %49 = vmatpush1.msra.mxu0 0.0
  %50 = vmatprep.subr.mxu0 0.0
  %51 = vmatpush1.msra.mxu0 0.0
  %52 = vmatprep.subr.mxu0 0.0
  %53 = vmatpush1.msra.mxu0 0.0
  %54 = vmatprep.subr.mxu0 0.0
  %55 = vmatpush1.msra.mxu0 0.0
  %56 = vmatprep.subr.mxu0 0.0
  %57 = vmatpush1.msra.mxu0 0.0
  %58 = vmatprep.subr.mxu0 0.0
  %59 = vmatpush1.msra.mxu0 0.0
  %60 = vmatprep.subr.mxu0 0.0
  %61 = vmatpush1.msra.mxu0 0.0
  %62 = vmatprep.subr.mxu0 0.0
  %63 = vmatpush1.msra.mxu0 0.0
  %64 = vmatprep.subr.mxu0 0.0
  %65 = vmatpush1.msra.mxu0 0.0
  %66 = vmatprep.subr.mxu0 0.0
  %67 = vmatpush1.msra.mxu0 0.0
  %68 = vmatprep.subr.mxu0 0.0
  %69 = vmatpush1.msra.mxu0 0.0
  %70 = vmatprep.subr.mxu0 0.0
  %71 = vmatpush1.msra.mxu0 %v31
  %72 = vmatprep.subr.mxu0 0.0
  %73 = vmatpush1.msra.mxu0 %v30
  %74 = vmatprep.subr.mxu0 0.0
  %75 = vmatpush1.msra.mxu0 %v29
  %76 = vmatprep.subr.mxu0 0.0
  %77 = vmatpush1.msra.mxu0 %v28
  %78 = vmatprep.subr.mxu0 0.0
  %79 = vmatpush2.msra.mxu0 0.0
  %80 = vmatprep.subr.mxu0 0.0
  %81 = vmatpush2.msra.mxu0 0.0
  %82 = vmatprep.subr.mxu0 0.0
  %83 = vmatpush2.msra.mxu0 0.0
  %84 = vmatprep.subr.mxu0 0.0
  %85 = vmatpush2.msra.mxu0 0.0
  %86 = vmatprep.subr.mxu0 0.0
  %87 = vmatpush2.msra.mxu0 0.0
  %88 = vmatprep.subr.mxu0 0.0
  %89 = vmatpush2.msra.mxu0 0.0
  %90 = vmatprep.subr.mxu0 0.0
  %91 = vmatpush2.msra.mxu0 0.0
  %92 = vmatprep.subr.mxu0 0.0
  %93 = vmatpush2.msra.mxu0 0.0
  %94 = vmatprep.subr.mxu0 0.0
  %95 = vmatpush2.msra.mxu0 0.0
  %96 = vmatprep.subr.mxu0 0.0
  %97 = vmatpush2.msra.mxu0 0.0
  %98 = vmatprep.subr.mxu0 0.0
  %99 = vmatpush2.msra.mxu0 0.0
  %100 = vmatprep.subr.mxu0 0.0
  %101 = vmatpush2.msra.mxu0 0.0
  %102 = vmatprep.subr.mxu0 0.0
  %103 = vmatpush2.msra.mxu0 0.0
  %104 = vmatprep.subr.mxu0 0.0
  %105 = vmatpush2.msra.mxu0 0.0
  %106 = vmatprep.subr.mxu0 0.0
  %107 = vmatpush2.msra.mxu0 0.0
  %108 = vmatprep.subr.mxu0 0.0
  %109 = vmatpush2.msra.mxu0 0.0
  %110 = vmatprep.mubr.f32.mxu0 0.0
  %111 = vmatmul.mubr.f32.gmra.mxu0 %v41
  %v112 = vpop.f32.mrf.mxu0
  %v113 = vadd.f32 %v37, %v112
  %v114 = vpop.f32.mrf.mxu0
  %115 = vmatprep.mubr.f32.mxu0 0.0
  %116 = vmatmul.mubr.f32.gmra.mxu0 %v44
  %v117 = vpop.f32.mrf.mxu0
  %v118 = vadd.f32 %v37, %v117
  %v119 = vpop.f32.mrf.mxu0
  %120 = vdwg.mxu0
  %v121 = vmax.f32 %v113, 0.0
  %v122 = vmax.f32 %v118, 0.0
  %v123 = vld [vmem:[%s3] sm:$0xff]
  %v124 = vld [vmem:[%s3 + $0x8] sm:$0xff]
  %v125 = vld [vmem:[%s3 + $0x10] sm:$0xff]
  %v126 = vld [vmem:[%s3 + $0x18] sm:$0xff]
  %v127 = vld [vmem:[%s3 + $0x20] sm:$0xff]
  %v128 = vld [vmem:[%s3 + $0x28] sm:$0xff]
  %v129 = vld [vmem:[%s3 + $0x30] sm:$0xff]
  %v130 = vld [vmem:[%s3 + $0x38] sm:$0xff]
  %v131 = vld [vmem:[%s4] sm:$0x1]
  %v133 = vlaneseq
  %v134 = vshrl.u32 %v133, 7
  %v135 = vsub.s32 0, %v134
  %v136 = vrot.slane %v131, %v135
  %vm138 = vcmask 523264
  %v140 = vsel %vm138, %v121, 0
  %v143 = vsel %vm138, %v122, 0
  %145 = vmatprep.subr.mxu0 0.0
  %146 = vmatpush1.msra.mxu0 0.0
  %147 = vmatprep.subr.mxu0 0.0
  %148 = vmatpush1.msra.mxu0 0.0
  %149 = vmatprep.subr.mxu0 0.0
  %150 = vmatpush1.msra.mxu0 0.0
  %151 = vmatprep.subr.mxu0 0.0
  %152 = vmatpush1.msra.mxu0 0.0
  %153 = vmatprep.subr.mxu0 0.0
  %154 = vmatpush1.msra.mxu0 0.0
  %155 = vmatprep.subr.mxu0 0.0
  %156 = vmatpush1.msra.mxu0 0.0
  %157 = vmatprep.subr.mxu0 0.0
  %158 = vmatpush1.msra.mxu0 0.0
  %159 = vmatprep.subr.mxu0 0.0
  %160 = vmatpush1.msra.mxu0 0.0
  %161 = vmatprep.subr.mxu0 0.0
  %162 = vmatpush1.msra.mxu0 %v130
  %163 = vmatprep.subr.mxu0 0.0
  %164 = vmatpush1.msra.mxu0 %v129
  %165 = vmatprep.subr.mxu0 0.0
  %166 = vmatpush1.msra.mxu0 %v128
  %167 = vmatprep.subr.mxu0 0.0
  %168 = vmatpush1.msra.mxu0 %v127
  %169 = vmatprep.subr.mxu0 0.0
  %170 = vmatpush1.msra.mxu0 %v126
  %171 = vmatprep.subr.mxu0 0.0
  %172 = vmatpush1.msra.mxu0 %v125
  %173 = vmatprep.subr.mxu0 0.0
  %174 = vmatpush1.msra.mxu0 %v124
  %175 = vmatprep.subr.mxu0 0.0
  %176 = vmatpush1.msra.mxu0 %v123
  %177 = vmatprep.subr.mxu0 0.0
  %178 = vmatpush2.msra.mxu0 0.0
  %179 = vmatprep.subr.mxu0 0.0
  %180 = vmatpush2.msra.mxu0 0.0
  %181 = vmatprep.subr.mxu0 0.0
  %182 = vmatpush2.msra.mxu0 0.0
  %183 = vmatprep.subr.mxu0 0.0
  %184 = vmatpush2.msra.mxu0 0.0
  %185 = vmatprep.subr.mxu0 0.0
  %186 = vmatpush2.msra.mxu0 0.0
  %187 = vmatprep.subr.mxu0 0.0
  %188 = vmatpush2.msra.mxu0 0.0
  %189 = vmatprep.subr.mxu0 0.0
  %190 = vmatpush2.msra.mxu0 0.0
  %191 = vmatprep.subr.mxu0 0.0
  %192 = vmatpush2.msra.mxu0 0.0
  %193 = vmatprep.subr.mxu0 0.0
  %194 = vmatpush2.msra.mxu0 0.0
  %195 = vmatprep.subr.mxu0 0.0
  %196 = vmatpush2.msra.mxu0 0.0
  %197 = vmatprep.subr.mxu0 0.0
  %198 = vmatpush2.msra.mxu0 0.0
  %199 = vmatprep.subr.mxu0 0.0
  %200 = vmatpush2.msra.mxu0 0.0
  %201 = vmatprep.subr.mxu0 0.0
  %202 = vmatpush2.msra.mxu0 0.0
  %203 = vmatprep.subr.mxu0 0.0
  %204 = vmatpush2.msra.mxu0 0.0
  %205 = vmatprep.subr.mxu0 0.0
  %206 = vmatpush2.msra.mxu0 0.0
  %207 = vmatprep.subr.mxu0 0.0
  %208 = vmatpush2.msra.mxu0 0.0
  %209 = vmatprep.mubr.f32.mxu0 0.0
  %210 = vmatmul.mubr.f32.gmra.mxu0 %v140
  %v211 = vpop.f32.mrf.mxu0
  %v212 = vadd.f32 %v136, %v211
  %v213 = vpop.f32.mrf.mxu0
  %214 = vmatprep.mubr.f32.mxu0 0.0
  %215 = vmatmul.mubr.f32.gmra.mxu0 %v143
  %v216 = vpop.f32.mrf.mxu0
  %v217 = vadd.f32 %v136, %v216
  %v218 = vpop.f32.mrf.mxu0
  %219 = vdwg.mxu0
  %v220 = vadd.f32 %v212, %v26
  %v221 = vadd.f32 %v217, %v27
  %v222 = vsel %vm39, %v220, 0.0
  %223 = vadd.xlane.f32.xlu0 %v222
  %v224 = vpop.xlane.xlu0 %223
  %v225 = vsel %vm39, %v221, 0.0
  %226 = vadd.xlane.f32.xlu0 %v225
  %v227 = vpop.xlane.xlu0 %226
  %v228 = vrcp.pop 32.0
  %v229 = vmul.f32 %v224, %v228
  %v230 = vmul.f32 %v227, %v228
  %v231 = vsub.f32 %v220, %v229
  %v232 = vsub.f32 %v221, %v230
  %v233 = vmul.f32 %v231, %v231
  %v234 = vmul.f32 %v232, %v232
  %v235 = vsel %vm39, %v233, 0.0
  %236 = vadd.xlane.f32.xlu0 %v235
  %v237 = vpop.xlane.xlu0 %236
  %v238 = vsel %vm39, %v234, 0.0
  %239 = vadd.xlane.f32.xlu0 %v238
  %v240 = vpop.xlane.xlu0 %239
  %v241 = vmul.f32 %v237, %v228
  %v242 = vmul.f32 %v240, %v228
  %v243 = vadd.f32 %v241, 1e-05
  %v244 = vadd.f32 %v242, 1e-05
  %v245 = vrsqrt.pop %v243
  %v246 = vrsqrt.pop %v244
  %v247 = vmul.f32 %v231, %v245
  %v248 = vmul.f32 %v232, %v246
  %v249 = vld [vmem:[%s5] sm:$0x1]
  %v251 = vlaneseq
  %v252 = vshrl.u32 %v251, 7
  %v253 = vsub.s32 0, %v252
  %v254 = vrot.slane %v249, %v253
  %v256 = vmul.f32 %v247, %v254
  %v257 = vmul.f32 %v248, %v254
  %v258 = vld [vmem:[%s6] sm:$0x1]
  %v260 = vlaneseq
  %v261 = vshrl.u32 %v260, 7
  %v262 = vsub.s32 0, %v261
  %v263 = vrot.slane %v258, %v262
  %v265 = vadd.f32 %v256, %v263
  %v266 = vadd.f32 %v257, %v263
  %267 = vst.msk [vmem:[%s7] sm:$0xff] %vm39, %v265
  %268 = vst.msk [vmem:[%s7 + $0x8] sm:$0xff] %vm39, %v266
  // Predicated region
  $region30: #{transformer_autoencoder_forward.32} parent=0 // pred_check
    _
  $region31: #{transformer_autoencoder_forward.32} parent=0 // pred_check_branch
    %270 = sbr.rel (0) target = $region33
  $region32: #{transformer_autoencoder_forward.32} parent=0 // pred_region
    _
  $region33: #{transformer_autoencoder_forward.32} parent=0 // pred_fallthru
    _
  // Predicated region
  $region34: #{transformer_autoencoder_forward.32} parent=0 // pred_check
    _
  $region35: #{transformer_autoencoder_forward.32} parent=0 // pred_check_branch
    %272 = sbr.rel (0) target = $region37
  $region36: #{transformer_autoencoder_forward.32} parent=0 // pred_region
    _
  $region37: #{transformer_autoencoder_forward.32} parent=0 // pred_fallthru
    _

// kernel: transformer_autoencoder_forward.41
$region0: #{transformer_autoencoder_forward.41}
  #allocation0 [shape = 'u32[]', space=smem, size = 0x4, offset = 0x4, fixed_abs, tag = 'smem constant byte address 0x4 - core index']
  #allocation1 [shape = 'u32[144,128]{1,0:T(1,128)}', space=vmem, size = 0x12000, scoped, tag = 'internal scratch']
  %s0 = inlined_call_operand.vmem [shape: f32[16,32], index: 0, kind: input, shape index: {}]
  %s1 = inlined_call_operand.vmem [shape: f32[32,32], index: 1, kind: input, shape index: {}]
  %s2 = inlined_call_operand.vmem [shape: f32[1,32], index: 2, kind: input, shape index: {}]
  %s3 = inlined_call_operand.vmem [shape: f32[16,32], index: 3, kind: output, shape index: {}]
  %s4 = sld [smem:[#allocation0]]
  $region22: #{transformer_autoencoder_forward.41} parent=0
    _
  %s6 = ssub.s32 1, %s4
  %s7 = scalar_select 0, %s6, %s4
  // Predicated region
  $region2: #{transformer_autoencoder_forward.41} parent=0 // pred_check
    _
  $region3: #{transformer_autoencoder_forward.41} parent=0 // pred_check_branch
    %9 = sbr.rel (0) target = $region5
  $region4: #{transformer_autoencoder_forward.41} parent=0 // pred_region
    _
  $region5: #{transformer_autoencoder_forward.41} parent=0 // pred_fallthru
    _
  // Predicated region
  $region6: #{transformer_autoencoder_forward.41} parent=0 // pred_check
    _
  $region7: #{transformer_autoencoder_forward.41} parent=0 // pred_check_branch
    %11 = sbr.rel (0) target = $region9
  $region8: #{transformer_autoencoder_forward.41} parent=0 // pred_region
    _
  $region9: #{transformer_autoencoder_forward.41} parent=0 // pred_fallthru
    _
  // Predicated region
  $region10: #{transformer_autoencoder_forward.41} parent=0 // pred_check
    _
  $region11: #{transformer_autoencoder_forward.41} parent=0 // pred_check_branch
    %13 = sbr.rel (0) target = $region13
  $region12: #{transformer_autoencoder_forward.41} parent=0 // pred_region
    _
  $region13: #{transformer_autoencoder_forward.41} parent=0 // pred_fallthru
    _
  %v14 = vld [vmem:[%s0] sm:$0xff]
  %v15 = vld [vmem:[%s0 + $0x8] sm:$0xff]
  %v16 = vld [vmem:[%s1] sm:$0xff]
  %v17 = vld [vmem:[%s1 + $0x8] sm:$0xff]
  %v18 = vld [vmem:[%s1 + $0x10] sm:$0xff]
  %v19 = vld [vmem:[%s1 + $0x18] sm:$0xff]
  %v20 = vld [vmem:[%s2] sm:$0x1]
  %v22 = vlaneseq
  %v23 = vshrl.u32 %v22, 7
  %v24 = vsub.s32 0, %v23
  %v25 = vrot.slane %v20, %v24
  %vm27 = vcmask 261120
  %v29 = vsel %vm27, %v14, 0
  %v32 = vsel %vm27, %v15, 0
  %34 = vmatprep.subr.mxu0 0.0
  %35 = vmatpush1.msra.mxu0 0.0
  %36 = vmatprep.subr.mxu0 0.0
  %37 = vmatpush1.msra.mxu0 0.0
  %38 = vmatprep.subr.mxu0 0.0
  %39 = vmatpush1.msra.mxu0 0.0
  %40 = vmatprep.subr.mxu0 0.0
  %41 = vmatpush1.msra.mxu0 0.0
  %42 = vmatprep.subr.mxu0 0.0
  %43 = vmatpush1.msra.mxu0 0.0
  %44 = vmatprep.subr.mxu0 0.0
  %45 = vmatpush1.msra.mxu0 0.0
  %46 = vmatprep.subr.mxu0 0.0
  %47 = vmatpush1.msra.mxu0 0.0
  %48 = vmatprep.subr.mxu0 0.0
  %49 = vmatpush1.msra.mxu0 0.0
  %50 = vmatprep.subr.mxu0 0.0
  %51 = vmatpush1.msra.mxu0 0.0
  %52 = vmatprep.subr.mxu0 0.0
  %53 = vmatpush1.msra.mxu0 0.0
  %54 = vmatprep.subr.mxu0 0.0
  %55 = vmatpush1.msra.mxu0 0.0
  %56 = vmatprep.subr.mxu0 0.0
  %57 = vmatpush1.msra.mxu0 0.0
  %58 = vmatprep.subr.mxu0 0.0
  %59 = vmatpush1.msra.mxu0 %v19
  %60 = vmatprep.subr.mxu0 0.0
  %61 = vmatpush1.msra.mxu0 %v18
  %62 = vmatprep.subr.mxu0 0.0
  %63 = vmatpush1.msra.mxu0 %v17
  %64 = vmatprep.subr.mxu0 0.0
  %65 = vmatpush1.msra.mxu0 %v16
  %66 = vmatprep.subr.mxu0 0.0
  %67 = vmatpush2.msra.mxu0 0.0
  %68 = vmatprep.subr.mxu0 0.0
  %69 = vmatpush2.msra.mxu0 0.0
  %70 = vmatprep.subr.mxu0 0.0
  %71 = vmatpush2.msra.mxu0 0.0
  %72 = vmatprep.subr.mxu0 0.0
  %73 = vmatpush2.msra.mxu0 0.0
  %74 = vmatprep.subr.mxu0 0.0
  %75 = vmatpush2.msra.mxu0 0.0
  %76 = vmatprep.subr.mxu0 0.0
  %77 = vmatpush2.msra.mxu0 0.0
  %78 = vmatprep.subr.mxu0 0.0
  %79 = vmatpush2.msra.mxu0 0.0
  %80 = vmatprep.subr.mxu0 0.0
  %81 = vmatpush2.msra.mxu0 0.0
  %82 = vmatprep.subr.mxu0 0.0
  %83 = vmatpush2.msra.mxu0 0.0
  %84 = vmatprep.subr.mxu0 0.0
  %85 = vmatpush2.msra.mxu0 0.0
  %86 = vmatprep.subr.mxu0 0.0
  %87 = vmatpush2.msra.mxu0 0.0
  %88 = vmatprep.subr.mxu0 0.0
  %89 = vmatpush2.msra.mxu0 0.0
  %90 = vmatprep.subr.mxu0 0.0
  %91 = vmatpush2.msra.mxu0 0.0
  %92 = vmatprep.subr.mxu0 0.0
  %93 = vmatpush2.msra.mxu0 0.0
  %94 = vmatprep.subr.mxu0 0.0
  %95 = vmatpush2.msra.mxu0 0.0
  %96 = vmatprep.subr.mxu0 0.0
  %97 = vmatpush2.msra.mxu0 0.0
  %98 = vmatprep.mubr.f32.mxu0 0.0
  %99 = vmatmul.mubr.f32.gmra.mxu0 %v29
  %v100 = vpop.f32.mrf.mxu0
  %v101 = vadd.f32 %v25, %v100
  %v102 = vpop.f32.mrf.mxu0
  %103 = vmatprep.mubr.f32.mxu0 0.0
  %104 = vmatmul.mubr.f32.gmra.mxu0 %v32
  %v105 = vpop.f32.mrf.mxu0
  %v106 = vadd.f32 %v25, %v105
  %v107 = vpop.f32.mrf.mxu0
  %108 = vdwg.mxu0
  %109 = vst.msk [vmem:[%s3] sm:$0xff] %vm27, %v101
  %110 = vst.msk [vmem:[%s3 + $0x8] sm:$0xff] %vm27, %v106
  // Predicated region
  $region14: #{transformer_autoencoder_forward.41} parent=0 // pred_check
    _
  $region15: #{transformer_autoencoder_forward.41} parent=0 // pred_check_branch
    %112 = sbr.rel (0) target = $region17
  $region16: #{transformer_autoencoder_forward.41} parent=0 // pred_region
    _
  $region17: #{transformer_autoencoder_forward.41} parent=0 // pred_fallthru
    _
  // Predicated region
  $region18: #{transformer_autoencoder_forward.41} parent=0 // pred_check
    _
  $region19: #{transformer_autoencoder_forward.41} parent=0 // pred_check_branch
    %114 = sbr.rel (0) target = $region21
  $region20: #{transformer_autoencoder_forward.41} parent=0 // pred_region
    _
  $region21: #{transformer_autoencoder_forward.41} parent=0 // pred_fallthru
    _

// kernel: transformer_autoencoder_forward.42
$region0: #{transformer_autoencoder_forward.42}
  #allocation0 [shape = 'u32[]', space=smem, size = 0x4, offset = 0x4, fixed_abs, tag = 'smem constant byte address 0x4 - core index']
  #allocation1 [shape = 'u32[144,128]{1,0:T(1,128)}', space=vmem, size = 0x12000, scoped, tag = 'internal scratch']
  %s0 = inlined_call_operand.vmem [shape: f32[16,32], index: 0, kind: input, shape index: {}]
  %s1 = inlined_call_operand.vmem [shape: f32[32,64], index: 1, kind: input, shape index: {}]
  %s2 = inlined_call_operand.vmem [shape: f32[1,64], index: 2, kind: input, shape index: {}]
  %s3 = inlined_call_operand.vmem [shape: f32[16,64], index: 3, kind: output, shape index: {}]
  %s4 = sld [smem:[#allocation0]]
  $region22: #{transformer_autoencoder_forward.42} parent=0
    _
  %s6 = ssub.s32 1, %s4
  %s7 = scalar_select 0, %s6, %s4
  // Predicated region
  $region2: #{transformer_autoencoder_forward.42} parent=0 // pred_check
    _
  $region3: #{transformer_autoencoder_forward.42} parent=0 // pred_check_branch
    %9 = sbr.rel (0) target = $region5
  $region4: #{transformer_autoencoder_forward.42} parent=0 // pred_region
    _
  $region5: #{transformer_autoencoder_forward.42} parent=0 // pred_fallthru
    _
  // Predicated region
  $region6: #{transformer_autoencoder_forward.42} parent=0 // pred_check
    _
  $region7: #{transformer_autoencoder_forward.42} parent=0 // pred_check_branch
    %11 = sbr.rel (0) target = $region9
  $region8: #{transformer_autoencoder_forward.42} parent=0 // pred_region
    _
  $region9: #{transformer_autoencoder_forward.42} parent=0 // pred_fallthru
    _
  // Predicated region
  $region10: #{transformer_autoencoder_forward.42} parent=0 // pred_check
    _
  $region11: #{transformer_autoencoder_forward.42} parent=0 // pred_check_branch
    %13 = sbr.rel (0) target = $region13
  $region12: #{transformer_autoencoder_forward.42} parent=0 // pred_region
    _
  $region13: #{transformer_autoencoder_forward.42} parent=0 // pred_fallthru
    _
  %v14 = vld [vmem:[%s0] sm:$0xff]
  %v15 = vld [vmem:[%s0 + $0x8] sm:$0xff]
  %v16 = vld [vmem:[%s1] sm:$0xff]
  %v17 = vld [vmem:[%s1 + $0x8] sm:$0xff]
  %v18 = vld [vmem:[%s1 + $0x10] sm:$0xff]
  %v19 = vld [vmem:[%s1 + $0x18] sm:$0xff]
  %v20 = vld [vmem:[%s2] sm:$0x1]
  %v22 = vlaneseq
  %v23 = vshrl.u32 %v22, 7
  %v24 = vsub.s32 0, %v23
  %v25 = vrot.slane %v20, %v24
  %vm27 = vcmask 261120
  %v29 = vsel %vm27, %v14, 0
  %v32 = vsel %vm27, %v15, 0
  %34 = vmatprep.subr.mxu0 0.0
  %35 = vmatpush1.msra.mxu0 0.0
  %36 = vmatprep.subr.mxu0 0.0
  %37 = vmatpush1.msra.mxu0 0.0
  %38 = vmatprep.subr.mxu0 0.0
  %39 = vmatpush1.msra.mxu0 0.0
  %40 = vmatprep.subr.mxu0 0.0
  %41 = vmatpush1.msra.mxu0 0.0
  %42 = vmatprep.subr.mxu0 0.0
  %43 = vmatpush1.msra.mxu0 0.0
  %44 = vmatprep.subr.mxu0 0.0
  %45 = vmatpush1.msra.mxu0 0.0
  %46 = vmatprep.subr.mxu0 0.0
  %47 = vmatpush1.msra.mxu0 0.0
  %48 = vmatprep.subr.mxu0 0.0
  %49 = vmatpush1.msra.mxu0 0.0
  %50 = vmatprep.subr.mxu0 0.0
  %51 = vmatpush1.msra.mxu0 0.0
  %52 = vmatprep.subr.mxu0 0.0
  %53 = vmatpush1.msra.mxu0 0.0
  %54 = vmatprep.subr.mxu0 0.0
  %55 = vmatpush1.msra.mxu0 0.0
  %56 = vmatprep.subr.mxu0 0.0
  %57 = vmatpush1.msra.mxu0 0.0
  %58 = vmatprep.subr.mxu0 0.0
  %59 = vmatpush1.msra.mxu0 %v19
  %60 = vmatprep.subr.mxu0 0.0
  %61 = vmatpush1.msra.mxu0 %v18
  %62 = vmatprep.subr.mxu0 0.0
  %63 = vmatpush1.msra.mxu0 %v17
  %64 = vmatprep.subr.mxu0 0.0
  %65 = vmatpush1.msra.mxu0 %v16
  %66 = vmatprep.subr.mxu0 0.0
  %67 = vmatpush2.msra.mxu0 0.0
  %68 = vmatprep.subr.mxu0 0.0
  %69 = vmatpush2.msra.mxu0 0.0
  %70 = vmatprep.subr.mxu0 0.0
  %71 = vmatpush2.msra.mxu0 0.0
  %72 = vmatprep.subr.mxu0 0.0
  %73 = vmatpush2.msra.mxu0 0.0
  %74 = vmatprep.subr.mxu0 0.0
  %75 = vmatpush2.msra.mxu0 0.0
  %76 = vmatprep.subr.mxu0 0.0
  %77 = vmatpush2.msra.mxu0 0.0
  %78 = vmatprep.subr.mxu0 0.0
  %79 = vmatpush2.msra.mxu0 0.0
  %80 = vmatprep.subr.mxu0 0.0
  %81 = vmatpush2.msra.mxu0 0.0
  %82 = vmatprep.subr.mxu0 0.0
  %83 = vmatpush2.msra.mxu0 0.0
  %84 = vmatprep.subr.mxu0 0.0
  %85 = vmatpush2.msra.mxu0 0.0
  %86 = vmatprep.subr.mxu0 0.0
  %87 = vmatpush2.msra.mxu0 0.0
  %88 = vmatprep.subr.mxu0 0.0
  %89 = vmatpush2.msra.mxu0 0.0
  %90 = vmatprep.subr.mxu0 0.0
  %91 = vmatpush2.msra.mxu0 0.0
  %92 = vmatprep.subr.mxu0 0.0
  %93 = vmatpush2.msra.mxu0 0.0
  %94 = vmatprep.subr.mxu0 0.0
  %95 = vmatpush2.msra.mxu0 0.0
  %96 = vmatprep.subr.mxu0 0.0
  %97 = vmatpush2.msra.mxu0 0.0
  %98 = vmatprep.mubr.f32.mxu0 0.0
  %99 = vmatmul.mubr.f32.gmra.mxu0 %v29
  %v100 = vpop.f32.mrf.mxu0
  %v101 = vadd.f32 %v25, %v100
  %v102 = vpop.f32.mrf.mxu0
  %103 = vmatprep.mubr.f32.mxu0 0.0
  %104 = vmatmul.mubr.f32.gmra.mxu0 %v32
  %v105 = vpop.f32.mrf.mxu0
  %v106 = vadd.f32 %v25, %v105
  %v107 = vpop.f32.mrf.mxu0
  %108 = vdwg.mxu0
  %vm109 = vcmask 523264
  %110 = vst.msk [vmem:[%s3] sm:$0xff] %vm109, %v101
  %111 = vst.msk [vmem:[%s3 + $0x8] sm:$0xff] %vm109, %v106
  // Predicated region
  $region14: #{transformer_autoencoder_forward.42} parent=0 // pred_check
    _
  $region15: #{transformer_autoencoder_forward.42} parent=0 // pred_check_branch
    %113 = sbr.rel (0) target = $region17
  $region16: #{transformer_autoencoder_forward.42} parent=0 // pred_region
    _
  $region17: #{transformer_autoencoder_forward.42} parent=0 // pred_fallthru
    _
  // Predicated region
  $region18: #{transformer_autoencoder_forward.42} parent=0 // pred_check
    _
  $region19: #{transformer_autoencoder_forward.42} parent=0 // pred_check_branch
    %115 = sbr.rel (0) target = $region21
  $region20: #{transformer_autoencoder_forward.42} parent=0 // pred_region
    _
  $region21: #{transformer_autoencoder_forward.42} parent=0 // pred_fallthru
    _

// kernel: transformer_autoencoder_forward.55
$region0: #{transformer_autoencoder_forward.55}
  #allocation0 [shape = 'u32[]', space=smem, size = 0x4, offset = 0x4, fixed_abs, tag = 'smem constant byte address 0x4 - core index']
  #allocation1 [shape = 'u32[144,128]{1,0:T(1,128)}', space=vmem, size = 0x12000, scoped, tag = 'internal scratch']
  #allocation2 [shape = 'f32[1,1]{1,0:T(1,128)S(1)}', space=vmem, size = 0x200, scoped, tag = 'scoped memory for transformer_autoencoder_forward.55']
  %s0 = inlined_call_operand.vmem [shape: f32[16,32], index: 0, kind: input, shape index: {}]
  %s1 = inlined_call_operand.vmem [shape: f32[32,1], index: 1, kind: input, shape index: {}]
  %s2 = inlined_call_operand.<no memory space> [shape: f32[1,1], index: 2, kind: input, shape index: {}]
  %s3 = inlined_call_operand.vmem [shape: f32[16,1], index: 3, kind: output, shape index: {}]
  %s4 = sld [smem:[#allocation0]]
  $region22: #{transformer_autoencoder_forward.55} parent=0
    _
  %s6 = ssub.s32 1, %s4
  %s7 = scalar_select 0, %s6, %s4
  %v8 = vstv %s2
  %9 = vst [vmem:[#allocation2] sm:$0x1] %v8
  // Predicated region
  $region2: #{transformer_autoencoder_forward.55} parent=0 // pred_check
    _
  $region3: #{transformer_autoencoder_forward.55} parent=0 // pred_check_branch
    %11 = sbr.rel (0) target = $region5
  $region4: #{transformer_autoencoder_forward.55} parent=0 // pred_region
    _
  $region5: #{transformer_autoencoder_forward.55} parent=0 // pred_fallthru
    _
  // Predicated region
  $region6: #{transformer_autoencoder_forward.55} parent=0 // pred_check
    _
  $region7: #{transformer_autoencoder_forward.55} parent=0 // pred_check_branch
    %13 = sbr.rel (0) target = $region9
  $region8: #{transformer_autoencoder_forward.55} parent=0 // pred_region
    _
  $region9: #{transformer_autoencoder_forward.55} parent=0 // pred_fallthru
    _
  // Predicated region
  $region10: #{transformer_autoencoder_forward.55} parent=0 // pred_check
    _
  $region11: #{transformer_autoencoder_forward.55} parent=0 // pred_check_branch
    %15 = sbr.rel (0) target = $region13
  $region12: #{transformer_autoencoder_forward.55} parent=0 // pred_region
    _
  $region13: #{transformer_autoencoder_forward.55} parent=0 // pred_fallthru
    _
  %v16 = vld [vmem:[%s0] sm:$0xff]
  %v17 = vld [vmem:[%s0 + $0x8] sm:$0xff]
  %v18 = vld [vmem:[%s1] sm:$0xff]
  %v19 = vld [vmem:[%s1 + $0x8] sm:$0xff]
  %v20 = vld [vmem:[%s1 + $0x10] sm:$0xff]
  %v21 = vld [vmem:[%s1 + $0x18] sm:$0xff]
  %v22 = vld [vmem:[#allocation2] sm:$0x1]
  %v24 = vlaneseq
  %v25 = vshrl.u32 %v24, 7
  %v26 = vsub.s32 0, %v25
  %v27 = vrot.slane %v22, %v26
  %vm29 = vcmask 261120
  %v31 = vsel %vm29, %v16, 0
  %v34 = vsel %vm29, %v17, 0
  %36 = vmatprep.subr.mxu0 0.0
  %37 = vmatpush1.msra.mxu0 0.0
  %38 = vmatprep.subr.mxu0 0.0
  %39 = vmatpush1.msra.mxu0 0.0
  %40 = vmatprep.subr.mxu0 0.0
  %41 = vmatpush1.msra.mxu0 0.0
  %42 = vmatprep.subr.mxu0 0.0
  %43 = vmatpush1.msra.mxu0 0.0
  %44 = vmatprep.subr.mxu0 0.0
  %45 = vmatpush1.msra.mxu0 0.0
  %46 = vmatprep.subr.mxu0 0.0
  %47 = vmatpush1.msra.mxu0 0.0
  %48 = vmatprep.subr.mxu0 0.0
  %49 = vmatpush1.msra.mxu0 0.0
  %50 = vmatprep.subr.mxu0 0.0
  %51 = vmatpush1.msra.mxu0 0.0
  %52 = vmatprep.subr.mxu0 0.0
  %53 = vmatpush1.msra.mxu0 0.0
  %54 = vmatprep.subr.mxu0 0.0
  %55 = vmatpush1.msra.mxu0 0.0
  %56 = vmatprep.subr.mxu0 0.0
  %57 = vmatpush1.msra.mxu0 0.0
  %58 = vmatprep.subr.mxu0 0.0
  %59 = vmatpush1.msra.mxu0 0.0
  %60 = vmatprep.subr.mxu0 0.0
  %61 = vmatpush1.msra.mxu0 %v21
  %62 = vmatprep.subr.mxu0 0.0
  %63 = vmatpush1.msra.mxu0 %v20
  %64 = vmatprep.subr.mxu0 0.0
  %65 = vmatpush1.msra.mxu0 %v19
  %66 = vmatprep.subr.mxu0 0.0
  %67 = vmatpush1.msra.mxu0 %v18
  %68 = vmatprep.subr.mxu0 0.0
  %69 = vmatpush2.msra.mxu0 0.0
  %70 = vmatprep.subr.mxu0 0.0
  %71 = vmatpush2.msra.mxu0 0.0
  %72 = vmatprep.subr.mxu0 0.0
  %73 = vmatpush2.msra.mxu0 0.0
  %74 = vmatprep.subr.mxu0 0.0
  %75 = vmatpush2.msra.mxu0 0.0
  %76 = vmatprep.subr.mxu0 0.0
  %77 = vmatpush2.msra.mxu0 0.0
  %78 = vmatprep.subr.mxu0 0.0
  %79 = vmatpush2.msra.mxu0 0.0
  %80 = vmatprep.subr.mxu0 0.0
  %81 = vmatpush2.msra.mxu0 0.0
  %82 = vmatprep.subr.mxu0 0.0
  %83 = vmatpush2.msra.mxu0 0.0
  %84 = vmatprep.subr.mxu0 0.0
  %85 = vmatpush2.msra.mxu0 0.0
  %86 = vmatprep.subr.mxu0 0.0
  %87 = vmatpush2.msra.mxu0 0.0
  %88 = vmatprep.subr.mxu0 0.0
  %89 = vmatpush2.msra.mxu0 0.0
  %90 = vmatprep.subr.mxu0 0.0
  %91 = vmatpush2.msra.mxu0 0.0
  %92 = vmatprep.subr.mxu0 0.0
  %93 = vmatpush2.msra.mxu0 0.0
  %94 = vmatprep.subr.mxu0 0.0
  %95 = vmatpush2.msra.mxu0 0.0
  %96 = vmatprep.subr.mxu0 0.0
  %97 = vmatpush2.msra.mxu0 0.0
  %98 = vmatprep.subr.mxu0 0.0
  %99 = vmatpush2.msra.mxu0 0.0
  %100 = vmatprep.mubr.f32.mxu0 0.0
  %101 = vmatmul.mubr.f32.gmra.mxu0 %v31
  %v102 = vpop.f32.mrf.mxu0
  %v103 = vadd.f32 %v27, %v102
  %v104 = vpop.f32.mrf.mxu0
  %105 = vmatprep.mubr.f32.mxu0 0.0
  %106 = vmatmul.mubr.f32.gmra.mxu0 %v34
  %v107 = vpop.f32.mrf.mxu0
  %v108 = vadd.f32 %v27, %v107
  %v109 = vpop.f32.mrf.mxu0
  %110 = vdwg.mxu0
  %vm111 = vcmask 7168
  %112 = vst.msk [vmem:[%s3] sm:$0xff] %vm111, %v103
  %113 = vst.msk [vmem:[%s3 + $0x8] sm:$0xff] %vm111, %v108
  // Predicated region
  $region14: #{transformer_autoencoder_forward.55} parent=0 // pred_check
    _
  $region15: #{transformer_autoencoder_forward.55} parent=0 // pred_check_branch
    %115 = sbr.rel (0) target = $region17
  $region16: #{transformer_autoencoder_forward.55} parent=0 // pred_region
    _
  $region17: #{transformer_autoencoder_forward.55} parent=0 // pred_fallthru
    _
  // Predicated region
  $region18: #{transformer_autoencoder_forward.55} parent=0 // pred_check
    _
  $region19: #{transformer_autoencoder_forward.55} parent=0 // pred_check_branch
    %117 = sbr.rel (0) target = $region21
  $region20: #{transformer_autoencoder_forward.55} parent=0 // pred_region
    _
  $region21: #{transformer_autoencoder_forward.55} parent=0 // pred_fallthru
    _

</llo_original>
